<compile_context>
chip_gen: v7x
topology: tpu7x:2x2x1
jax: 0.10.0
libtpu: 0.0.40
codegen_flags: <defaults>
</compile_context>

<pallas_src>
import jax
import jax.numpy as jnp
from jax import lax
from jax.experimental import pallas as pl
from jax.experimental.pallas import tpu as pltpu

NUM_INPUTS = 2
NUM_HIDDEN = 64
NUM_OUTPUTS = 2
NUM_STEPS = 20
BETA = 0.95
THRESHOLD = 1.0
OUT_LANES = 128  # lane-padded output slab (2 * NUM_STEPS * NUM_OUTPUTS = 80 useful)


def trafficnet_kernel(x_ref, w1_ref, b1_ref, w2_ref, b2_ref, out_ref,
                      spk1_scr, cur2_scr):
    x = x_ref[...]                     # [B, 2]
    b1 = b1_ref[...]                   # [1, 64]
    w2 = w2_ref[...]                   # [64, 2]
    b2 = b2_ref[...]                   # [1, 2]
    bsz = x.shape[0]

    # Zero the whole (lane-padded) output tile once so the padded lanes are
    # defined; per-step column writes below overwrite the useful lanes.
    out_ref[...] = jnp.zeros_like(out_ref)

    # fc1 with K=2 on the VPU: two broadcast FMAs instead of an MXU matmul.
    # cur1 is identical every step (same x each step) -> compute once.
    cur1 = (x[:, 0:1] * w1_ref[0:1, :]
            + x[:, 1:2] * w1_ref[1:2, :]
            + b1)                      # [B, 64]

    # Phase 1: hidden-layer Leaky recurrence (elementwise, VPU only).
    # Each step's spikes go straight to VMEM scratch -> no register-resident
    # list / sublane concat.
    def phase1_body(t, mem1):
        reset1 = (mem1 > THRESHOLD).astype(jnp.float32)
        mem1 = BETA * mem1 + cur1 - reset1 * THRESHOLD
        spk1 = (mem1 > THRESHOLD).astype(jnp.float32)
        row = pl.multiple_of(t * bsz, 8)
        spk1_scr[pl.ds(row, bsz), :] = spk1
        return mem1

    lax.fori_loop(0, NUM_STEPS, phase1_body,
                  jnp.zeros((bsz, NUM_HIDDEN), jnp.float32), unroll=True)

    # Phase 2: ONE MXU matmul for all time steps at once; result parked in a
    # small VMEM scratch instead of ~20 mostly-empty vregs.
    cur2_scr[...] = (jnp.dot(spk1_scr[...], w2,
                             preferred_element_type=jnp.float32) + b2)  # [T*B, 2]

    # Phase 3: output-layer Leaky recurrence (cheap elementwise).  Per-step
    # results are written directly into the VMEM-resident output tile at
    # static lane offsets (the HBM writeback is still a single DMA).
    half = NUM_STEPS * NUM_OUTPUTS
    mem2 = jnp.zeros((bsz, NUM_OUTPUTS), jnp.float32)
    for t in range(NUM_STEPS):  # static loop -> static lane offsets for stores
        cur2 = cur2_scr[t * bsz:(t + 1) * bsz, :]                    # [B, 2]
        reset2 = (mem2 > THRESHOLD).astype(jnp.float32)
        mem2 = BETA * mem2 + cur2 - reset2 * THRESHOLD
        spk2 = (mem2 > THRESHOLD).astype(jnp.float32)
        out_ref[:, t * NUM_OUTPUTS:(t + 1) * NUM_OUTPUTS] = spk2
        out_ref[:, half + t * NUM_OUTPUTS:half + (t + 1) * NUM_OUTPUTS] = mem2


@jax.jit
def trafficnet_forward(x, w1, b1, w2, b2):
    B = x.shape[0]
    B_pad = max(8, ((B + 7) // 8) * 8)  # fill sublanes (8 rows per vreg)
    if B_pad != B:
        x = jnp.pad(x, ((0, B_pad - B), (0, 0)))

    vmem = pl.BlockSpec(memory_space=pltpu.MemorySpace.VMEM)  # whole array, VMEM-resident
    slab = pl.pallas_call(
        trafficnet_kernel,
        out_shape=jax.ShapeDtypeStruct((B_pad, OUT_LANES), jnp.float32),
        in_specs=[vmem, vmem, vmem, vmem, vmem],
        out_specs=vmem,
        scratch_shapes=[
            pltpu.VMEM((NUM_STEPS * B_pad, NUM_HIDDEN), jnp.float32),   # spk1 stack
            pltpu.VMEM((NUM_STEPS * B_pad, NUM_OUTPUTS), jnp.float32),  # cur2 stack
        ],
    )(x, w1, b1, w2, b2)

    half = NUM_STEPS * NUM_OUTPUTS
    spk = slab[:, :half].reshape(B_pad, NUM_STEPS, NUM_OUTPUTS)
    mem = slab[:, half:2 * half].reshape(B_pad, NUM_STEPS, NUM_OUTPUTS)
    spk = jnp.transpose(spk, (1, 0, 2))[:, :B, :]   # -> (T, B, NUM_OUTPUTS)
    mem = jnp.transpose(mem, (1, 0, 2))[:, :B, :]
    return spk, mem


def init_params(key):
    """Deterministic params, matching torch.nn.Linear init distribution."""
    k1, k2, k3, k4 = jax.random.split(key, 4)
    bound1 = 1.0 / (NUM_INPUTS ** 0.5)
    bound2 = 1.0 / (NUM_HIDDEN ** 0.5)
    w1 = jax.random.uniform(k1, (NUM_INPUTS, NUM_HIDDEN), jnp.float32, -bound1, bound1)
    b1 = jax.random.uniform(k2, (1, NUM_HIDDEN), jnp.float32, -bound1, bound1)
    w2 = jax.random.uniform(k3, (NUM_HIDDEN, NUM_OUTPUTS), jnp.float32, -bound2, bound2)
    b2 = jax.random.uniform(k4, (1, NUM_OUTPUTS), jnp.float32, -bound2, bound2)
    return w1, b1, w2, b2


def reference_forward(x, w1, b1, w2, b2):
    """Plain-JAX reference of the torch forward (for correctness check)."""
    B = x.shape[0]
    mem1 = jnp.zeros((B, NUM_HIDDEN), jnp.float32)
    mem2 = jnp.zeros((B, NUM_OUTPUTS), jnp.float32)
    spk_rec, mem_rec = [], []
    for _ in range(NUM_STEPS):
        cur1 = x @ w1 + b1
        reset1 = (mem1 > THRESHOLD).astype(jnp.float32)
        mem1 = BETA * mem1 + cur1 - reset1 * THRESHOLD
        spk1 = (mem1 > THRESHOLD).astype(jnp.float32)
        cur2 = spk1 @ w2 + b2
        reset2 = (mem2 > THRESHOLD).astype(jnp.float32)
        mem2 = BETA * mem2 + cur2 - reset2 * THRESHOLD
        spk2 = (mem2 > THRESHOLD).astype(jnp.float32)
        spk_rec.append(spk2)
        mem_rec.append(mem2)
    return jnp.stack(spk_rec, axis=0), jnp.stack(mem_rec, axis=0)


# TODO(synk): train_network / DataLoader / MSELoss / Adam are host-side training
# utilities, not part of the forward pass, and are intentionally not ported.

if __name__ == "__main__":
    key = jax.random.PRNGKey(0)
    kx, kp = jax.random.split(key)

    batch = 2  # module uses batch_size=1 but forward is batch-generic
    x = jax.random.uniform(kx, (batch, NUM_INPUTS), jnp.float32)  # like torch.rand traffic data
    w1, b1, w2, b2 = init_params(kp)

    spk_rec, mem_rec = trafficnet_forward(x, w1, b1, w2, b2)
    jax.block_until_ready((spk_rec, mem_rec))

    spk_ref, mem_ref = reference_forward(x, w1, b1, w2, b2)
    assert spk_rec.shape == (NUM_STEPS, batch, NUM_OUTPUTS)
    assert mem_rec.shape == (NUM_STEPS, batch, NUM_OUTPUTS)
    assert jnp.allclose(spk_rec, spk_ref, atol=1e-5)
    assert jnp.allclose(mem_rec, mem_ref, atol=1e-5)

    print("KERNEL_OK")
</pallas_src>

<mosaic_0001>
module attributes {stable_mosaic.version = 11 : i64} {
  func.func @trafficnet_kernel(%arg0: memref<8x2xf32, #tpu.memory_space<vmem>>, %arg1: memref<2x64xf32, #tpu.memory_space<vmem>>, %arg2: memref<1x64xf32, #tpu.memory_space<vmem>>, %arg3: memref<64x2xf32, #tpu.memory_space<vmem>>, %arg4: memref<1x2xf32, #tpu.memory_space<vmem>>, %arg5: memref<8x128xf32, #tpu.memory_space<vmem>>, %arg6: memref<160x64xf32, #tpu.memory_space<vmem>>, %arg7: memref<160x2xf32, #tpu.memory_space<vmem>>) attributes {dimension_semantics = [], scalar_prefetch = 0 : i64, scratch_operands = 2 : i64, tpu.core_type = #tpu.core_type<tc>} {
    %c0 = arith.constant 0 : index
    %c0_0 = arith.constant 0 : index
    %0 = vector.load %arg0[%c0, %c0_0] : memref<8x2xf32, #tpu.memory_space<vmem>>, vector<8x2xf32>
    %c0_1 = arith.constant 0 : index
    %c0_2 = arith.constant 0 : index
    %1 = vector.load %arg2[%c0_1, %c0_2] : memref<1x64xf32, #tpu.memory_space<vmem>>, vector<1x64xf32>
    %c0_3 = arith.constant 0 : index
    %c0_4 = arith.constant 0 : index
    %2 = vector.load %arg3[%c0_3, %c0_4] : memref<64x2xf32, #tpu.memory_space<vmem>>, vector<64x2xf32>
    %c0_5 = arith.constant 0 : index
    %c0_6 = arith.constant 0 : index
    %3 = vector.load %arg4[%c0_5, %c0_6] : memref<1x2xf32, #tpu.memory_space<vmem>>, vector<1x2xf32>
    %cst = arith.constant 0.000000e+00 : f32
    %4 = vector.broadcast %cst : f32 to vector<8x128xf32>
    %c0_7 = arith.constant 0 : index
    %c0_8 = arith.constant 0 : index
    %5 = vector.load %arg5[%c0_7, %c0_8] : memref<8x128xf32, #tpu.memory_space<vmem>>, vector<8x128xf32>
    tpu.vector_store %arg5[%c0_7, %c0_8], %4 {strides = array<i32>} : memref<8x128xf32, #tpu.memory_space<vmem>>, vector<8x128xf32>,
    %6 = vector.extract_strided_slice %0 {offsets = [0, 0], sizes = [8, 1], strides = [1, 1]} : vector<8x2xf32> to vector<8x1xf32>
    %c0_9 = arith.constant 0 : index
    %c0_10 = arith.constant 0 : index
    %7 = vector.load %arg1[%c0_9, %c0_10] : memref<2x64xf32, #tpu.memory_space<vmem>>, vector<1x64xf32>
    %8 = vector.broadcast %6 : vector<8x1xf32> to vector<8x64xf32>
    %9 = vector.broadcast %7 : vector<1x64xf32> to vector<8x64xf32>
    %10 = arith.mulf %8, %9 : vector<8x64xf32>
    %11 = vector.extract_strided_slice %0 {offsets = [0, 1], sizes = [8, 1], strides = [1, 1]} : vector<8x2xf32> to vector<8x1xf32>
    %c1 = arith.constant 1 : index
    %c0_11 = arith.constant 0 : index
    %12 = vector.load %arg1[%c1, %c0_11] : memref<2x64xf32, #tpu.memory_space<vmem>>, vector<1x64xf32>
    %13 = vector.broadcast %11 : vector<8x1xf32> to vector<8x64xf32>
    %14 = vector.broadcast %12 : vector<1x64xf32> to vector<8x64xf32>
    %15 = arith.mulf %13, %14 : vector<8x64xf32>
    %16 = arith.addf %10, %15 : vector<8x64xf32>
    %17 = vector.broadcast %1 : vector<1x64xf32> to vector<8x64xf32>
    %18 = arith.addf %16, %17 : vector<8x64xf32>
    %cst_12 = arith.constant 0.000000e+00 : f32
    %19 = vector.broadcast %cst_12 : f32 to vector<8x64xf32>
    %c0_i32 = arith.constant 0 : i32
    %cst_13 = arith.constant 1.000000e+00 : f32
    %20 = vector.broadcast %cst_13 : f32 to vector<8x64xf32>
    %21 = arith.cmpf ogt, %19, %20 : vector<8x64xf32>
    %22 = arith.extui %21 : vector<8x64xi1> to vector<8x64xi32>
    %23 = arith.sitofp %22 : vector<8x64xi32> to vector<8x64xf32>
    %cst_14 = arith.constant 0.949999988 : f32
    %24 = vector.broadcast %cst_14 : f32 to vector<8x64xf32>
    %25 = arith.mulf %24, %19 : vector<8x64xf32>
    %26 = arith.addf %25, %18 : vector<8x64xf32>
    %cst_15 = arith.constant 1.000000e+00 : f32
    %27 = vector.broadcast %cst_15 : f32 to vector<8x64xf32>
    %28 = arith.mulf %23, %27 : vector<8x64xf32>
    %29 = arith.subf %26, %28 : vector<8x64xf32>
    %cst_16 = arith.constant 1.000000e+00 : f32
    %30 = vector.broadcast %cst_16 : f32 to vector<8x64xf32>
    %31 = arith.cmpf ogt, %29, %30 : vector<8x64xf32>
    %32 = arith.extui %31 : vector<8x64xi1> to vector<8x64xi32>
    %33 = arith.sitofp %32 : vector<8x64xi32> to vector<8x64xf32>
    %c8_i32 = arith.constant 8 : i32
    %34 = arith.muli %c0_i32, %c8_i32 : i32
    %35 = tpu.assume_multiple %34, 8 : i32
    %36 = arith.index_cast %35 : i32 to index
    %c0_17 = arith.constant 0 : index
    %37 = vector.load %arg6[%36, %c0_17] : memref<160x64xf32, #tpu.memory_space<vmem>>, vector<8x64xf32>
    tpu.vector_store %arg6[%36, %c0_17], %33 {strides = array<i32>} : memref<160x64xf32, #tpu.memory_space<vmem>>, vector<8x64xf32>,
    %c1_i32 = arith.constant 1 : i32
    %cst_18 = arith.constant 1.000000e+00 : f32
    %38 = vector.broadcast %cst_18 : f32 to vector<8x64xf32>
    %39 = arith.cmpf ogt, %29, %38 : vector<8x64xf32>
    %40 = arith.extui %39 : vector<8x64xi1> to vector<8x64xi32>
    %41 = arith.sitofp %40 : vector<8x64xi32> to vector<8x64xf32>
    %cst_19 = arith.constant 0.949999988 : f32
    %42 = vector.broadcast %cst_19 : f32 to vector<8x64xf32>
    %43 = arith.mulf %42, %29 : vector<8x64xf32>
    %44 = arith.addf %43, %18 : vector<8x64xf32>
    %cst_20 = arith.constant 1.000000e+00 : f32
    %45 = vector.broadcast %cst_20 : f32 to vector<8x64xf32>
    %46 = arith.mulf %41, %45 : vector<8x64xf32>
    %47 = arith.subf %44, %46 : vector<8x64xf32>
    %cst_21 = arith.constant 1.000000e+00 : f32
    %48 = vector.broadcast %cst_21 : f32 to vector<8x64xf32>
    %49 = arith.cmpf ogt, %47, %48 : vector<8x64xf32>
    %50 = arith.extui %49 : vector<8x64xi1> to vector<8x64xi32>
    %51 = arith.sitofp %50 : vector<8x64xi32> to vector<8x64xf32>
    %c8_i32_22 = arith.constant 8 : i32
    %52 = arith.muli %c1_i32, %c8_i32_22 : i32
    %53 = tpu.assume_multiple %52, 8 : i32
    %54 = arith.index_cast %53 : i32 to index
    %c0_23 = arith.constant 0 : index
    %55 = vector.load %arg6[%54, %c0_23] : memref<160x64xf32, #tpu.memory_space<vmem>>, vector<8x64xf32>
    tpu.vector_store %arg6[%54, %c0_23], %51 {strides = array<i32>} : memref<160x64xf32, #tpu.memory_space<vmem>>, vector<8x64xf32>,
    %c2_i32 = arith.constant 2 : i32
    %cst_24 = arith.constant 1.000000e+00 : f32
    %56 = vector.broadcast %cst_24 : f32 to vector<8x64xf32>
    %57 = arith.cmpf ogt, %47, %56 : vector<8x64xf32>
    %58 = arith.extui %57 : vector<8x64xi1> to vector<8x64xi32>
    %59 = arith.sitofp %58 : vector<8x64xi32> to vector<8x64xf32>
    %cst_25 = arith.constant 0.949999988 : f32
    %60 = vector.broadcast %cst_25 : f32 to vector<8x64xf32>
    %61 = arith.mulf %60, %47 : vector<8x64xf32>
    %62 = arith.addf %61, %18 : vector<8x64xf32>
    %cst_26 = arith.constant 1.000000e+00 : f32
    %63 = vector.broadcast %cst_26 : f32 to vector<8x64xf32>
    %64 = arith.mulf %59, %63 : vector<8x64xf32>
    %65 = arith.subf %62, %64 : vector<8x64xf32>
    %cst_27 = arith.constant 1.000000e+00 : f32
    %66 = vector.broadcast %cst_27 : f32 to vector<8x64xf32>
    %67 = arith.cmpf ogt, %65, %66 : vector<8x64xf32>
    %68 = arith.extui %67 : vector<8x64xi1> to vector<8x64xi32>
    %69 = arith.sitofp %68 : vector<8x64xi32> to vector<8x64xf32>
    %c8_i32_28 = arith.constant 8 : i32
    %70 = arith.muli %c2_i32, %c8_i32_28 : i32
    %71 = tpu.assume_multiple %70, 8 : i32
    %72 = arith.index_cast %71 : i32 to index
    %c0_29 = arith.constant 0 : index
    %73 = vector.load %arg6[%72, %c0_29] : memref<160x64xf32, #tpu.memory_space<vmem>>, vector<8x64xf32>
    tpu.vector_store %arg6[%72, %c0_29], %69 {strides = array<i32>} : memref<160x64xf32, #tpu.memory_space<vmem>>, vector<8x64xf32>,
    %c3_i32 = arith.constant 3 : i32
    %cst_30 = arith.constant 1.000000e+00 : f32
    %74 = vector.broadcast %cst_30 : f32 to vector<8x64xf32>
    %75 = arith.cmpf ogt, %65, %74 : vector<8x64xf32>
    %76 = arith.extui %75 : vector<8x64xi1> to vector<8x64xi32>
    %77 = arith.sitofp %76 : vector<8x64xi32> to vector<8x64xf32>
    %cst_31 = arith.constant 0.949999988 : f32
    %78 = vector.broadcast %cst_31 : f32 to vector<8x64xf32>
    %79 = arith.mulf %78, %65 : vector<8x64xf32>
    %80 = arith.addf %79, %18 : vector<8x64xf32>
    %cst_32 = arith.constant 1.000000e+00 : f32
    %81 = vector.broadcast %cst_32 : f32 to vector<8x64xf32>
    %82 = arith.mulf %77, %81 : vector<8x64xf32>
    %83 = arith.subf %80, %82 : vector<8x64xf32>
    %cst_33 = arith.constant 1.000000e+00 : f32
    %84 = vector.broadcast %cst_33 : f32 to vector<8x64xf32>
    %85 = arith.cmpf ogt, %83, %84 : vector<8x64xf32>
    %86 = arith.extui %85 : vector<8x64xi1> to vector<8x64xi32>
    %87 = arith.sitofp %86 : vector<8x64xi32> to vector<8x64xf32>
    %c8_i32_34 = arith.constant 8 : i32
    %88 = arith.muli %c3_i32, %c8_i32_34 : i32
    %89 = tpu.assume_multiple %88, 8 : i32
    %90 = arith.index_cast %89 : i32 to index
    %c0_35 = arith.constant 0 : index
    %91 = vector.load %arg6[%90, %c0_35] : memref<160x64xf32, #tpu.memory_space<vmem>>, vector<8x64xf32>
    tpu.vector_store %arg6[%90, %c0_35], %87 {strides = array<i32>} : memref<160x64xf32, #tpu.memory_space<vmem>>, vector<8x64xf32>,
    %c4_i32 = arith.constant 4 : i32
    %cst_36 = arith.constant 1.000000e+00 : f32
    %92 = vector.broadcast %cst_36 : f32 to vector<8x64xf32>
    %93 = arith.cmpf ogt, %83, %92 : vector<8x64xf32>
    %94 = arith.extui %93 : vector<8x64xi1> to vector<8x64xi32>
    %95 = arith.sitofp %94 : vector<8x64xi32> to vector<8x64xf32>
    %cst_37 = arith.constant 0.949999988 : f32
    %96 = vector.broadcast %cst_37 : f32 to vector<8x64xf32>
    %97 = arith.mulf %96, %83 : vector<8x64xf32>
    %98 = arith.addf %97, %18 : vector<8x64xf32>
    %cst_38 = arith.constant 1.000000e+00 : f32
    %99 = vector.broadcast %cst_38 : f32 to vector<8x64xf32>
    %100 = arith.mulf %95, %99 : vector<8x64xf32>
    %101 = arith.subf %98, %100 : vector<8x64xf32>
    %cst_39 = arith.constant 1.000000e+00 : f32
    %102 = vector.broadcast %cst_39 : f32 to vector<8x64xf32>
    %103 = arith.cmpf ogt, %101, %102 : vector<8x64xf32>
    %104 = arith.extui %103 : vector<8x64xi1> to vector<8x64xi32>
    %105 = arith.sitofp %104 : vector<8x64xi32> to vector<8x64xf32>
    %c8_i32_40 = arith.constant 8 : i32
    %106 = arith.muli %c4_i32, %c8_i32_40 : i32
    %107 = tpu.assume_multiple %106, 8 : i32
    %108 = arith.index_cast %107 : i32 to index
    %c0_41 = arith.constant 0 : index
    %109 = vector.load %arg6[%108, %c0_41] : memref<160x64xf32, #tpu.memory_space<vmem>>, vector<8x64xf32>
    tpu.vector_store %arg6[%108, %c0_41], %105 {strides = array<i32>} : memref<160x64xf32, #tpu.memory_space<vmem>>, vector<8x64xf32>,
    %c5_i32 = arith.constant 5 : i32
    %cst_42 = arith.constant 1.000000e+00 : f32
    %110 = vector.broadcast %cst_42 : f32 to vector<8x64xf32>
    %111 = arith.cmpf ogt, %101, %110 : vector<8x64xf32>
    %112 = arith.extui %111 : vector<8x64xi1> to vector<8x64xi32>
    %113 = arith.sitofp %112 : vector<8x64xi32> to vector<8x64xf32>
    %cst_43 = arith.constant 0.949999988 : f32
    %114 = vector.broadcast %cst_43 : f32 to vector<8x64xf32>
    %115 = arith.mulf %114, %101 : vector<8x64xf32>
    %116 = arith.addf %115, %18 : vector<8x64xf32>
    %cst_44 = arith.constant 1.000000e+00 : f32
    %117 = vector.broadcast %cst_44 : f32 to vector<8x64xf32>
    %118 = arith.mulf %113, %117 : vector<8x64xf32>
    %119 = arith.subf %116, %118 : vector<8x64xf32>
    %cst_45 = arith.constant 1.000000e+00 : f32
    %120 = vector.broadcast %cst_45 : f32 to vector<8x64xf32>
    %121 = arith.cmpf ogt, %119, %120 : vector<8x64xf32>
    %122 = arith.extui %121 : vector<8x64xi1> to vector<8x64xi32>
    %123 = arith.sitofp %122 : vector<8x64xi32> to vector<8x64xf32>
    %c8_i32_46 = arith.constant 8 : i32
    %124 = arith.muli %c5_i32, %c8_i32_46 : i32
    %125 = tpu.assume_multiple %124, 8 : i32
    %126 = arith.index_cast %125 : i32 to index
    %c0_47 = arith.constant 0 : index
    %127 = vector.load %arg6[%126, %c0_47] : memref<160x64xf32, #tpu.memory_space<vmem>>, vector<8x64xf32>
    tpu.vector_store %arg6[%126, %c0_47], %123 {strides = array<i32>} : memref<160x64xf32, #tpu.memory_space<vmem>>, vector<8x64xf32>,
    %c6_i32 = arith.constant 6 : i32
    %cst_48 = arith.constant 1.000000e+00 : f32
    %128 = vector.broadcast %cst_48 : f32 to vector<8x64xf32>
    %129 = arith.cmpf ogt, %119, %128 : vector<8x64xf32>
    %130 = arith.extui %129 : vector<8x64xi1> to vector<8x64xi32>
    %131 = arith.sitofp %130 : vector<8x64xi32> to vector<8x64xf32>
    %cst_49 = arith.constant 0.949999988 : f32
    %132 = vector.broadcast %cst_49 : f32 to vector<8x64xf32>
    %133 = arith.mulf %132, %119 : vector<8x64xf32>
    %134 = arith.addf %133, %18 : vector<8x64xf32>
    %cst_50 = arith.constant 1.000000e+00 : f32
    %135 = vector.broadcast %cst_50 : f32 to vector<8x64xf32>
    %136 = arith.mulf %131, %135 : vector<8x64xf32>
    %137 = arith.subf %134, %136 : vector<8x64xf32>
    %cst_51 = arith.constant 1.000000e+00 : f32
    %138 = vector.broadcast %cst_51 : f32 to vector<8x64xf32>
    %139 = arith.cmpf ogt, %137, %138 : vector<8x64xf32>
    %140 = arith.extui %139 : vector<8x64xi1> to vector<8x64xi32>
    %141 = arith.sitofp %140 : vector<8x64xi32> to vector<8x64xf32>
    %c8_i32_52 = arith.constant 8 : i32
    %142 = arith.muli %c6_i32, %c8_i32_52 : i32
    %143 = tpu.assume_multiple %142, 8 : i32
    %144 = arith.index_cast %143 : i32 to index
    %c0_53 = arith.constant 0 : index
    %145 = vector.load %arg6[%144, %c0_53] : memref<160x64xf32, #tpu.memory_space<vmem>>, vector<8x64xf32>
    tpu.vector_store %arg6[%144, %c0_53], %141 {strides = array<i32>} : memref<160x64xf32, #tpu.memory_space<vmem>>, vector<8x64xf32>,
    %c7_i32 = arith.constant 7 : i32
    %cst_54 = arith.constant 1.000000e+00 : f32
    %146 = vector.broadcast %cst_54 : f32 to vector<8x64xf32>
    %147 = arith.cmpf ogt, %137, %146 : vector<8x64xf32>
    %148 = arith.extui %147 : vector<8x64xi1> to vector<8x64xi32>
    %149 = arith.sitofp %148 : vector<8x64xi32> to vector<8x64xf32>
    %cst_55 = arith.constant 0.949999988 : f32
    %150 = vector.broadcast %cst_55 : f32 to vector<8x64xf32>
    %151 = arith.mulf %150, %137 : vector<8x64xf32>
    %152 = arith.addf %151, %18 : vector<8x64xf32>
    %cst_56 = arith.constant 1.000000e+00 : f32
    %153 = vector.broadcast %cst_56 : f32 to vector<8x64xf32>
    %154 = arith.mulf %149, %153 : vector<8x64xf32>
    %155 = arith.subf %152, %154 : vector<8x64xf32>
    %cst_57 = arith.constant 1.000000e+00 : f32
    %156 = vector.broadcast %cst_57 : f32 to vector<8x64xf32>
    %157 = arith.cmpf ogt, %155, %156 : vector<8x64xf32>
    %158 = arith.extui %157 : vector<8x64xi1> to vector<8x64xi32>
    %159 = arith.sitofp %158 : vector<8x64xi32> to vector<8x64xf32>
    %c8_i32_58 = arith.constant 8 : i32
    %160 = arith.muli %c7_i32, %c8_i32_58 : i32
    %161 = tpu.assume_multiple %160, 8 : i32
    %162 = arith.index_cast %161 : i32 to index
    %c0_59 = arith.constant 0 : index
    %163 = vector.load %arg6[%162, %c0_59] : memref<160x64xf32, #tpu.memory_space<vmem>>, vector<8x64xf32>
    tpu.vector_store %arg6[%162, %c0_59], %159 {strides = array<i32>} : memref<160x64xf32, #tpu.memory_space<vmem>>, vector<8x64xf32>,
    %c8_i32_60 = arith.constant 8 : i32
    %cst_61 = arith.constant 1.000000e+00 : f32
    %164 = vector.broadcast %cst_61 : f32 to vector<8x64xf32>
    %165 = arith.cmpf ogt, %155, %164 : vector<8x64xf32>
    %166 = arith.extui %165 : vector<8x64xi1> to vector<8x64xi32>
    %167 = arith.sitofp %166 : vector<8x64xi32> to vector<8x64xf32>
    %cst_62 = arith.constant 0.949999988 : f32
    %168 = vector.broadcast %cst_62 : f32 to vector<8x64xf32>
    %169 = arith.mulf %168, %155 : vector<8x64xf32>
    %170 = arith.addf %169, %18 : vector<8x64xf32>
    %cst_63 = arith.constant 1.000000e+00 : f32
    %171 = vector.broadcast %cst_63 : f32 to vector<8x64xf32>
    %172 = arith.mulf %167, %171 : vector<8x64xf32>
    %173 = arith.subf %170, %172 : vector<8x64xf32>
    %cst_64 = arith.constant 1.000000e+00 : f32
    %174 = vector.broadcast %cst_64 : f32 to vector<8x64xf32>
    %175 = arith.cmpf ogt, %173, %174 : vector<8x64xf32>
    %176 = arith.extui %175 : vector<8x64xi1> to vector<8x64xi32>
    %177 = arith.sitofp %176 : vector<8x64xi32> to vector<8x64xf32>
    %c8_i32_65 = arith.constant 8 : i32
    %178 = arith.muli %c8_i32_60, %c8_i32_65 : i32
    %179 = tpu.assume_multiple %178, 8 : i32
    %180 = arith.index_cast %179 : i32 to index
    %c0_66 = arith.constant 0 : index
    %181 = vector.load %arg6[%180, %c0_66] : memref<160x64xf32, #tpu.memory_space<vmem>>, vector<8x64xf32>
    tpu.vector_store %arg6[%180, %c0_66], %177 {strides = array<i32>} : memref<160x64xf32, #tpu.memory_space<vmem>>, vector<8x64xf32>,
    %c9_i32 = arith.constant 9 : i32
    %cst_67 = arith.constant 1.000000e+00 : f32
    %182 = vector.broadcast %cst_67 : f32 to vector<8x64xf32>
    %183 = arith.cmpf ogt, %173, %182 : vector<8x64xf32>
    %184 = arith.extui %183 : vector<8x64xi1> to vector<8x64xi32>
    %185 = arith.sitofp %184 : vector<8x64xi32> to vector<8x64xf32>
    %cst_68 = arith.constant 0.949999988 : f32
    %186 = vector.broadcast %cst_68 : f32 to vector<8x64xf32>
    %187 = arith.mulf %186, %173 : vector<8x64xf32>
    %188 = arith.addf %187, %18 : vector<8x64xf32>
    %cst_69 = arith.constant 1.000000e+00 : f32
    %189 = vector.broadcast %cst_69 : f32 to vector<8x64xf32>
    %190 = arith.mulf %185, %189 : vector<8x64xf32>
    %191 = arith.subf %188, %190 : vector<8x64xf32>
    %cst_70 = arith.constant 1.000000e+00 : f32
    %192 = vector.broadcast %cst_70 : f32 to vector<8x64xf32>
    %193 = arith.cmpf ogt, %191, %192 : vector<8x64xf32>
    %194 = arith.extui %193 : vector<8x64xi1> to vector<8x64xi32>
    %195 = arith.sitofp %194 : vector<8x64xi32> to vector<8x64xf32>
    %c8_i32_71 = arith.constant 8 : i32
    %196 = arith.muli %c9_i32, %c8_i32_71 : i32
    %197 = tpu.assume_multiple %196, 8 : i32
    %198 = arith.index_cast %197 : i32 to index
    %c0_72 = arith.constant 0 : index
    %199 = vector.load %arg6[%198, %c0_72] : memref<160x64xf32, #tpu.memory_space<vmem>>, vector<8x64xf32>
    tpu.vector_store %arg6[%198, %c0_72], %195 {strides = array<i32>} : memref<160x64xf32, #tpu.memory_space<vmem>>, vector<8x64xf32>,
    %c10_i32 = arith.constant 10 : i32
    %cst_73 = arith.constant 1.000000e+00 : f32
    %200 = vector.broadcast %cst_73 : f32 to vector<8x64xf32>
    %201 = arith.cmpf ogt, %191, %200 : vector<8x64xf32>
    %202 = arith.extui %201 : vector<8x64xi1> to vector<8x64xi32>
    %203 = arith.sitofp %202 : vector<8x64xi32> to vector<8x64xf32>
    %cst_74 = arith.constant 0.949999988 : f32
    %204 = vector.broadcast %cst_74 : f32 to vector<8x64xf32>
    %205 = arith.mulf %204, %191 : vector<8x64xf32>
    %206 = arith.addf %205, %18 : vector<8x64xf32>
    %cst_75 = arith.constant 1.000000e+00 : f32
    %207 = vector.broadcast %cst_75 : f32 to vector<8x64xf32>
    %208 = arith.mulf %203, %207 : vector<8x64xf32>
    %209 = arith.subf %206, %208 : vector<8x64xf32>
    %cst_76 = arith.constant 1.000000e+00 : f32
    %210 = vector.broadcast %cst_76 : f32 to vector<8x64xf32>
    %211 = arith.cmpf ogt, %209, %210 : vector<8x64xf32>
    %212 = arith.extui %211 : vector<8x64xi1> to vector<8x64xi32>
    %213 = arith.sitofp %212 : vector<8x64xi32> to vector<8x64xf32>
    %c8_i32_77 = arith.constant 8 : i32
    %214 = arith.muli %c10_i32, %c8_i32_77 : i32
    %215 = tpu.assume_multiple %214, 8 : i32
    %216 = arith.index_cast %215 : i32 to index
    %c0_78 = arith.constant 0 : index
    %217 = vector.load %arg6[%216, %c0_78] : memref<160x64xf32, #tpu.memory_space<vmem>>, vector<8x64xf32>
    tpu.vector_store %arg6[%216, %c0_78], %213 {strides = array<i32>} : memref<160x64xf32, #tpu.memory_space<vmem>>, vector<8x64xf32>,
    %c11_i32 = arith.constant 11 : i32
    %cst_79 = arith.constant 1.000000e+00 : f32
    %218 = vector.broadcast %cst_79 : f32 to vector<8x64xf32>
    %219 = arith.cmpf ogt, %209, %218 : vector<8x64xf32>
    %220 = arith.extui %219 : vector<8x64xi1> to vector<8x64xi32>
    %221 = arith.sitofp %220 : vector<8x64xi32> to vector<8x64xf32>
    %cst_80 = arith.constant 0.949999988 : f32
    %222 = vector.broadcast %cst_80 : f32 to vector<8x64xf32>
    %223 = arith.mulf %222, %209 : vector<8x64xf32>
    %224 = arith.addf %223, %18 : vector<8x64xf32>
    %cst_81 = arith.constant 1.000000e+00 : f32
    %225 = vector.broadcast %cst_81 : f32 to vector<8x64xf32>
    %226 = arith.mulf %221, %225 : vector<8x64xf32>
    %227 = arith.subf %224, %226 : vector<8x64xf32>
    %cst_82 = arith.constant 1.000000e+00 : f32
    %228 = vector.broadcast %cst_82 : f32 to vector<8x64xf32>
    %229 = arith.cmpf ogt, %227, %228 : vector<8x64xf32>
    %230 = arith.extui %229 : vector<8x64xi1> to vector<8x64xi32>
    %231 = arith.sitofp %230 : vector<8x64xi32> to vector<8x64xf32>
    %c8_i32_83 = arith.constant 8 : i32
    %232 = arith.muli %c11_i32, %c8_i32_83 : i32
    %233 = tpu.assume_multiple %232, 8 : i32
    %234 = arith.index_cast %233 : i32 to index
    %c0_84 = arith.constant 0 : index
    %235 = vector.load %arg6[%234, %c0_84] : memref<160x64xf32, #tpu.memory_space<vmem>>, vector<8x64xf32>
    tpu.vector_store %arg6[%234, %c0_84], %231 {strides = array<i32>} : memref<160x64xf32, #tpu.memory_space<vmem>>, vector<8x64xf32>,
    %c12_i32 = arith.constant 12 : i32
    %cst_85 = arith.constant 1.000000e+00 : f32
    %236 = vector.broadcast %cst_85 : f32 to vector<8x64xf32>
    %237 = arith.cmpf ogt, %227, %236 : vector<8x64xf32>
    %238 = arith.extui %237 : vector<8x64xi1> to vector<8x64xi32>
    %239 = arith.sitofp %238 : vector<8x64xi32> to vector<8x64xf32>
    %cst_86 = arith.constant 0.949999988 : f32
    %240 = vector.broadcast %cst_86 : f32 to vector<8x64xf32>
    %241 = arith.mulf %240, %227 : vector<8x64xf32>
    %242 = arith.addf %241, %18 : vector<8x64xf32>
    %cst_87 = arith.constant 1.000000e+00 : f32
    %243 = vector.broadcast %cst_87 : f32 to vector<8x64xf32>
    %244 = arith.mulf %239, %243 : vector<8x64xf32>
    %245 = arith.subf %242, %244 : vector<8x64xf32>
    %cst_88 = arith.constant 1.000000e+00 : f32
    %246 = vector.broadcast %cst_88 : f32 to vector<8x64xf32>
    %247 = arith.cmpf ogt, %245, %246 : vector<8x64xf32>
    %248 = arith.extui %247 : vector<8x64xi1> to vector<8x64xi32>
    %249 = arith.sitofp %248 : vector<8x64xi32> to vector<8x64xf32>
    %c8_i32_89 = arith.constant 8 : i32
    %250 = arith.muli %c12_i32, %c8_i32_89 : i32
    %251 = tpu.assume_multiple %250, 8 : i32
    %252 = arith.index_cast %251 : i32 to index
    %c0_90 = arith.constant 0 : index
    %253 = vector.load %arg6[%252, %c0_90] : memref<160x64xf32, #tpu.memory_space<vmem>>, vector<8x64xf32>
    tpu.vector_store %arg6[%252, %c0_90], %249 {strides = array<i32>} : memref<160x64xf32, #tpu.memory_space<vmem>>, vector<8x64xf32>,
    %c13_i32 = arith.constant 13 : i32
    %cst_91 = arith.constant 1.000000e+00 : f32
    %254 = vector.broadcast %cst_91 : f32 to vector<8x64xf32>
    %255 = arith.cmpf ogt, %245, %254 : vector<8x64xf32>
    %256 = arith.extui %255 : vector<8x64xi1> to vector<8x64xi32>
    %257 = arith.sitofp %256 : vector<8x64xi32> to vector<8x64xf32>
    %cst_92 = arith.constant 0.949999988 : f32
    %258 = vector.broadcast %cst_92 : f32 to vector<8x64xf32>
    %259 = arith.mulf %258, %245 : vector<8x64xf32>
    %260 = arith.addf %259, %18 : vector<8x64xf32>
    %cst_93 = arith.constant 1.000000e+00 : f32
    %261 = vector.broadcast %cst_93 : f32 to vector<8x64xf32>
    %262 = arith.mulf %257, %261 : vector<8x64xf32>
    %263 = arith.subf %260, %262 : vector<8x64xf32>
    %cst_94 = arith.constant 1.000000e+00 : f32
    %264 = vector.broadcast %cst_94 : f32 to vector<8x64xf32>
    %265 = arith.cmpf ogt, %263, %264 : vector<8x64xf32>
    %266 = arith.extui %265 : vector<8x64xi1> to vector<8x64xi32>
    %267 = arith.sitofp %266 : vector<8x64xi32> to vector<8x64xf32>
    %c8_i32_95 = arith.constant 8 : i32
    %268 = arith.muli %c13_i32, %c8_i32_95 : i32
    %269 = tpu.assume_multiple %268, 8 : i32
    %270 = arith.index_cast %269 : i32 to index
    %c0_96 = arith.constant 0 : index
    %271 = vector.load %arg6[%270, %c0_96] : memref<160x64xf32, #tpu.memory_space<vmem>>, vector<8x64xf32>
    tpu.vector_store %arg6[%270, %c0_96], %267 {strides = array<i32>} : memref<160x64xf32, #tpu.memory_space<vmem>>, vector<8x64xf32>,
    %c14_i32 = arith.constant 14 : i32
    %cst_97 = arith.constant 1.000000e+00 : f32
    %272 = vector.broadcast %cst_97 : f32 to vector<8x64xf32>
    %273 = arith.cmpf ogt, %263, %272 : vector<8x64xf32>
    %274 = arith.extui %273 : vector<8x64xi1> to vector<8x64xi32>
    %275 = arith.sitofp %274 : vector<8x64xi32> to vector<8x64xf32>
    %cst_98 = arith.constant 0.949999988 : f32
    %276 = vector.broadcast %cst_98 : f32 to vector<8x64xf32>
    %277 = arith.mulf %276, %263 : vector<8x64xf32>
    %278 = arith.addf %277, %18 : vector<8x64xf32>
    %cst_99 = arith.constant 1.000000e+00 : f32
    %279 = vector.broadcast %cst_99 : f32 to vector<8x64xf32>
    %280 = arith.mulf %275, %279 : vector<8x64xf32>
    %281 = arith.subf %278, %280 : vector<8x64xf32>
    %cst_100 = arith.constant 1.000000e+00 : f32
    %282 = vector.broadcast %cst_100 : f32 to vector<8x64xf32>
    %283 = arith.cmpf ogt, %281, %282 : vector<8x64xf32>
    %284 = arith.extui %283 : vector<8x64xi1> to vector<8x64xi32>
    %285 = arith.sitofp %284 : vector<8x64xi32> to vector<8x64xf32>
    %c8_i32_101 = arith.constant 8 : i32
    %286 = arith.muli %c14_i32, %c8_i32_101 : i32
    %287 = tpu.assume_multiple %286, 8 : i32
    %288 = arith.index_cast %287 : i32 to index
    %c0_102 = arith.constant 0 : index
    %289 = vector.load %arg6[%288, %c0_102] : memref<160x64xf32, #tpu.memory_space<vmem>>, vector<8x64xf32>
    tpu.vector_store %arg6[%288, %c0_102], %285 {strides = array<i32>} : memref<160x64xf32, #tpu.memory_space<vmem>>, vector<8x64xf32>,
    %c15_i32 = arith.constant 15 : i32
    %cst_103 = arith.constant 1.000000e+00 : f32
    %290 = vector.broadcast %cst_103 : f32 to vector<8x64xf32>
    %291 = arith.cmpf ogt, %281, %290 : vector<8x64xf32>
    %292 = arith.extui %291 : vector<8x64xi1> to vector<8x64xi32>
    %293 = arith.sitofp %292 : vector<8x64xi32> to vector<8x64xf32>
    %cst_104 = arith.constant 0.949999988 : f32
    %294 = vector.broadcast %cst_104 : f32 to vector<8x64xf32>
    %295 = arith.mulf %294, %281 : vector<8x64xf32>
    %296 = arith.addf %295, %18 : vector<8x64xf32>
    %cst_105 = arith.constant 1.000000e+00 : f32
    %297 = vector.broadcast %cst_105 : f32 to vector<8x64xf32>
    %298 = arith.mulf %293, %297 : vector<8x64xf32>
    %299 = arith.subf %296, %298 : vector<8x64xf32>
    %cst_106 = arith.constant 1.000000e+00 : f32
    %300 = vector.broadcast %cst_106 : f32 to vector<8x64xf32>
    %301 = arith.cmpf ogt, %299, %300 : vector<8x64xf32>
    %302 = arith.extui %301 : vector<8x64xi1> to vector<8x64xi32>
    %303 = arith.sitofp %302 : vector<8x64xi32> to vector<8x64xf32>
    %c8_i32_107 = arith.constant 8 : i32
    %304 = arith.muli %c15_i32, %c8_i32_107 : i32
    %305 = tpu.assume_multiple %304, 8 : i32
    %306 = arith.index_cast %305 : i32 to index
    %c0_108 = arith.constant 0 : index
    %307 = vector.load %arg6[%306, %c0_108] : memref<160x64xf32, #tpu.memory_space<vmem>>, vector<8x64xf32>
    tpu.vector_store %arg6[%306, %c0_108], %303 {strides = array<i32>} : memref<160x64xf32, #tpu.memory_space<vmem>>, vector<8x64xf32>,
    %c16_i32 = arith.constant 16 : i32
    %cst_109 = arith.constant 1.000000e+00 : f32
    %308 = vector.broadcast %cst_109 : f32 to vector<8x64xf32>
    %309 = arith.cmpf ogt, %299, %308 : vector<8x64xf32>
    %310 = arith.extui %309 : vector<8x64xi1> to vector<8x64xi32>
    %311 = arith.sitofp %310 : vector<8x64xi32> to vector<8x64xf32>
    %cst_110 = arith.constant 0.949999988 : f32
    %312 = vector.broadcast %cst_110 : f32 to vector<8x64xf32>
    %313 = arith.mulf %312, %299 : vector<8x64xf32>
    %314 = arith.addf %313, %18 : vector<8x64xf32>
    %cst_111 = arith.constant 1.000000e+00 : f32
    %315 = vector.broadcast %cst_111 : f32 to vector<8x64xf32>
    %316 = arith.mulf %311, %315 : vector<8x64xf32>
    %317 = arith.subf %314, %316 : vector<8x64xf32>
    %cst_112 = arith.constant 1.000000e+00 : f32
    %318 = vector.broadcast %cst_112 : f32 to vector<8x64xf32>
    %319 = arith.cmpf ogt, %317, %318 : vector<8x64xf32>
    %320 = arith.extui %319 : vector<8x64xi1> to vector<8x64xi32>
    %321 = arith.sitofp %320 : vector<8x64xi32> to vector<8x64xf32>
    %c8_i32_113 = arith.constant 8 : i32
    %322 = arith.muli %c16_i32, %c8_i32_113 : i32
    %323 = tpu.assume_multiple %322, 8 : i32
    %324 = arith.index_cast %323 : i32 to index
    %c0_114 = arith.constant 0 : index
    %325 = vector.load %arg6[%324, %c0_114] : memref<160x64xf32, #tpu.memory_space<vmem>>, vector<8x64xf32>
    tpu.vector_store %arg6[%324, %c0_114], %321 {strides = array<i32>} : memref<160x64xf32, #tpu.memory_space<vmem>>, vector<8x64xf32>,
    %c17_i32 = arith.constant 17 : i32
    %cst_115 = arith.constant 1.000000e+00 : f32
    %326 = vector.broadcast %cst_115 : f32 to vector<8x64xf32>
    %327 = arith.cmpf ogt, %317, %326 : vector<8x64xf32>
    %328 = arith.extui %327 : vector<8x64xi1> to vector<8x64xi32>
    %329 = arith.sitofp %328 : vector<8x64xi32> to vector<8x64xf32>
    %cst_116 = arith.constant 0.949999988 : f32
    %330 = vector.broadcast %cst_116 : f32 to vector<8x64xf32>
    %331 = arith.mulf %330, %317 : vector<8x64xf32>
    %332 = arith.addf %331, %18 : vector<8x64xf32>
    %cst_117 = arith.constant 1.000000e+00 : f32
    %333 = vector.broadcast %cst_117 : f32 to vector<8x64xf32>
    %334 = arith.mulf %329, %333 : vector<8x64xf32>
    %335 = arith.subf %332, %334 : vector<8x64xf32>
    %cst_118 = arith.constant 1.000000e+00 : f32
    %336 = vector.broadcast %cst_118 : f32 to vector<8x64xf32>
    %337 = arith.cmpf ogt, %335, %336 : vector<8x64xf32>
    %338 = arith.extui %337 : vector<8x64xi1> to vector<8x64xi32>
    %339 = arith.sitofp %338 : vector<8x64xi32> to vector<8x64xf32>
    %c8_i32_119 = arith.constant 8 : i32
    %340 = arith.muli %c17_i32, %c8_i32_119 : i32
    %341 = tpu.assume_multiple %340, 8 : i32
    %342 = arith.index_cast %341 : i32 to index
    %c0_120 = arith.constant 0 : index
    %343 = vector.load %arg6[%342, %c0_120] : memref<160x64xf32, #tpu.memory_space<vmem>>, vector<8x64xf32>
    tpu.vector_store %arg6[%342, %c0_120], %339 {strides = array<i32>} : memref<160x64xf32, #tpu.memory_space<vmem>>, vector<8x64xf32>,
    %c18_i32 = arith.constant 18 : i32
    %cst_121 = arith.constant 1.000000e+00 : f32
    %344 = vector.broadcast %cst_121 : f32 to vector<8x64xf32>
    %345 = arith.cmpf ogt, %335, %344 : vector<8x64xf32>
    %346 = arith.extui %345 : vector<8x64xi1> to vector<8x64xi32>
    %347 = arith.sitofp %346 : vector<8x64xi32> to vector<8x64xf32>
    %cst_122 = arith.constant 0.949999988 : f32
    %348 = vector.broadcast %cst_122 : f32 to vector<8x64xf32>
    %349 = arith.mulf %348, %335 : vector<8x64xf32>
    %350 = arith.addf %349, %18 : vector<8x64xf32>
    %cst_123 = arith.constant 1.000000e+00 : f32
    %351 = vector.broadcast %cst_123 : f32 to vector<8x64xf32>
    %352 = arith.mulf %347, %351 : vector<8x64xf32>
    %353 = arith.subf %350, %352 : vector<8x64xf32>
    %cst_124 = arith.constant 1.000000e+00 : f32
    %354 = vector.broadcast %cst_124 : f32 to vector<8x64xf32>
    %355 = arith.cmpf ogt, %353, %354 : vector<8x64xf32>
    %356 = arith.extui %355 : vector<8x64xi1> to vector<8x64xi32>
    %357 = arith.sitofp %356 : vector<8x64xi32> to vector<8x64xf32>
    %c8_i32_125 = arith.constant 8 : i32
    %358 = arith.muli %c18_i32, %c8_i32_125 : i32
    %359 = tpu.assume_multiple %358, 8 : i32
    %360 = arith.index_cast %359 : i32 to index
    %c0_126 = arith.constant 0 : index
    %361 = vector.load %arg6[%360, %c0_126] : memref<160x64xf32, #tpu.memory_space<vmem>>, vector<8x64xf32>
    tpu.vector_store %arg6[%360, %c0_126], %357 {strides = array<i32>} : memref<160x64xf32, #tpu.memory_space<vmem>>, vector<8x64xf32>,
    %c19_i32 = arith.constant 19 : i32
    %cst_127 = arith.constant 1.000000e+00 : f32
    %362 = vector.broadcast %cst_127 : f32 to vector<8x64xf32>
    %363 = arith.cmpf ogt, %353, %362 : vector<8x64xf32>
    %364 = arith.extui %363 : vector<8x64xi1> to vector<8x64xi32>
    %365 = arith.sitofp %364 : vector<8x64xi32> to vector<8x64xf32>
    %cst_128 = arith.constant 0.949999988 : f32
    %366 = vector.broadcast %cst_128 : f32 to vector<8x64xf32>
    %367 = arith.mulf %366, %353 : vector<8x64xf32>
    %368 = arith.addf %367, %18 : vector<8x64xf32>
    %cst_129 = arith.constant 1.000000e+00 : f32
    %369 = vector.broadcast %cst_129 : f32 to vector<8x64xf32>
    %370 = arith.mulf %365, %369 : vector<8x64xf32>
    %371 = arith.subf %368, %370 : vector<8x64xf32>
    %cst_130 = arith.constant 1.000000e+00 : f32
    %372 = vector.broadcast %cst_130 : f32 to vector<8x64xf32>
    %373 = arith.cmpf ogt, %371, %372 : vector<8x64xf32>
    %374 = arith.extui %373 : vector<8x64xi1> to vector<8x64xi32>
    %375 = arith.sitofp %374 : vector<8x64xi32> to vector<8x64xf32>
    %c8_i32_131 = arith.constant 8 : i32
    %376 = arith.muli %c19_i32, %c8_i32_131 : i32
    %377 = tpu.assume_multiple %376, 8 : i32
    %378 = arith.index_cast %377 : i32 to index
    %c0_132 = arith.constant 0 : index
    %379 = vector.load %arg6[%378, %c0_132] : memref<160x64xf32, #tpu.memory_space<vmem>>, vector<8x64xf32>
    tpu.vector_store %arg6[%378, %c0_132], %375 {strides = array<i32>} : memref<160x64xf32, #tpu.memory_space<vmem>>, vector<8x64xf32>,
    %c20_i32 = arith.constant 20 : i32
    %c0_133 = arith.constant 0 : index
    %c0_134 = arith.constant 0 : index
    %380 = vector.load %arg6[%c0_133, %c0_134] : memref<160x64xf32, #tpu.memory_space<vmem>>, vector<160x64xf32>
    %cst_135 = arith.constant dense<0.000000e+00> : vector<160x2xf32>
    %381 = tpu.matmul %380, %2, %cst_135 {dimension_numbers = #tpu.dot_dimension_numbers<[1], [0], [0], [1], [0, 0, 1, 1], [], []>} : vector<160x64xf32>, vector<64x2xf32>, vector<160x2xf32> -> vector<160x2xf32>
    %382 = vector.broadcast %3 : vector<1x2xf32> to vector<160x2xf32>
    %383 = arith.addf %381, %382 : vector<160x2xf32>
    %c0_136 = arith.constant 0 : index
    %c0_137 = arith.constant 0 : index
    %384 = vector.load %arg7[%c0_136, %c0_137] : memref<160x2xf32, #tpu.memory_space<vmem>>, vector<160x2xf32>
    tpu.vector_store %arg7[%c0_136, %c0_137], %383 {strides = array<i32>} : memref<160x2xf32, #tpu.memory_space<vmem>>, vector<160x2xf32>,
    %cst_138 = arith.constant 0.000000e+00 : f32
    %385 = vector.broadcast %cst_138 : f32 to vector<8x2xf32>
    %c0_139 = arith.constant 0 : index
    %c0_140 = arith.constant 0 : index
    %386 = vector.load %arg7[%c0_139, %c0_140] : memref<160x2xf32, #tpu.memory_space<vmem>>, vector<8x2xf32>
    %cst_141 = arith.constant 1.000000e+00 : f32
    %387 = vector.broadcast %cst_141 : f32 to vector<8x2xf32>
    %388 = arith.cmpf ogt, %385, %387 : vector<8x2xf32>
    %389 = arith.extui %388 : vector<8x2xi1> to vector<8x2xi32>
    %390 = arith.sitofp %389 : vector<8x2xi32> to vector<8x2xf32>
    %cst_142 = arith.constant 0.949999988 : f32
    %391 = vector.broadcast %cst_142 : f32 to vector<8x2xf32>
    %392 = arith.mulf %391, %385 : vector<8x2xf32>
    %393 = arith.addf %392, %386 : vector<8x2xf32>
    %cst_143 = arith.constant 1.000000e+00 : f32
    %394 = vector.broadcast %cst_143 : f32 to vector<8x2xf32>
    %395 = arith.mulf %390, %394 : vector<8x2xf32>
    %396 = arith.subf %393, %395 : vector<8x2xf32>
    %cst_144 = arith.constant 1.000000e+00 : f32
    %397 = vector.broadcast %cst_144 : f32 to vector<8x2xf32>
    %398 = arith.cmpf ogt, %396, %397 : vector<8x2xf32>
    %399 = arith.extui %398 : vector<8x2xi1> to vector<8x2xi32>
    %400 = arith.sitofp %399 : vector<8x2xi32> to vector<8x2xf32>
    %c0_145 = arith.constant 0 : index
    %c0_146 = arith.constant 0 : index
    %401 = vector.load %arg5[%c0_145, %c0_146] : memref<8x128xf32, #tpu.memory_space<vmem>>, vector<8x2xf32>
    tpu.vector_store %arg5[%c0_145, %c0_146], %400 {strides = array<i32>} : memref<8x128xf32, #tpu.memory_space<vmem>>, vector<8x2xf32>,
    %c0_147 = arith.constant 0 : index
    %c40 = arith.constant 40 : index
    %402 = vector.load %arg5[%c0_147, %c40] : memref<8x128xf32, #tpu.memory_space<vmem>>, vector<8x2xf32>
    tpu.vector_store %arg5[%c0_147, %c40], %396 {strides = array<i32>} : memref<8x128xf32, #tpu.memory_space<vmem>>, vector<8x2xf32>,
    %c8 = arith.constant 8 : index
    %c0_148 = arith.constant 0 : index
    %403 = vector.load %arg7[%c8, %c0_148] : memref<160x2xf32, #tpu.memory_space<vmem>>, vector<8x2xf32>
    %cst_149 = arith.constant 1.000000e+00 : f32
    %404 = vector.broadcast %cst_149 : f32 to vector<8x2xf32>
    %405 = arith.cmpf ogt, %396, %404 : vector<8x2xf32>
    %406 = arith.extui %405 : vector<8x2xi1> to vector<8x2xi32>
    %407 = arith.sitofp %406 : vector<8x2xi32> to vector<8x2xf32>
    %cst_150 = arith.constant 0.949999988 : f32
    %408 = vector.broadcast %cst_150 : f32 to vector<8x2xf32>
    %409 = arith.mulf %408, %396 : vector<8x2xf32>
    %410 = arith.addf %409, %403 : vector<8x2xf32>
    %cst_151 = arith.constant 1.000000e+00 : f32
    %411 = vector.broadcast %cst_151 : f32 to vector<8x2xf32>
    %412 = arith.mulf %407, %411 : vector<8x2xf32>
    %413 = arith.subf %410, %412 : vector<8x2xf32>
    %cst_152 = arith.constant 1.000000e+00 : f32
    %414 = vector.broadcast %cst_152 : f32 to vector<8x2xf32>
    %415 = arith.cmpf ogt, %413, %414 : vector<8x2xf32>
    %416 = arith.extui %415 : vector<8x2xi1> to vector<8x2xi32>
    %417 = arith.sitofp %416 : vector<8x2xi32> to vector<8x2xf32>
    %c0_153 = arith.constant 0 : index
    %c2 = arith.constant 2 : index
    %418 = vector.load %arg5[%c0_153, %c2] : memref<8x128xf32, #tpu.memory_space<vmem>>, vector<8x2xf32>
    tpu.vector_store %arg5[%c0_153, %c2], %417 {strides = array<i32>} : memref<8x128xf32, #tpu.memory_space<vmem>>, vector<8x2xf32>,
    %c0_154 = arith.constant 0 : index
    %c42 = arith.constant 42 : index
    %419 = vector.load %arg5[%c0_154, %c42] : memref<8x128xf32, #tpu.memory_space<vmem>>, vector<8x2xf32>
    tpu.vector_store %arg5[%c0_154, %c42], %413 {strides = array<i32>} : memref<8x128xf32, #tpu.memory_space<vmem>>, vector<8x2xf32>,
    %c16 = arith.constant 16 : index
    %c0_155 = arith.constant 0 : index
    %420 = vector.load %arg7[%c16, %c0_155] : memref<160x2xf32, #tpu.memory_space<vmem>>, vector<8x2xf32>
    %cst_156 = arith.constant 1.000000e+00 : f32
    %421 = vector.broadcast %cst_156 : f32 to vector<8x2xf32>
    %422 = arith.cmpf ogt, %413, %421 : vector<8x2xf32>
    %423 = arith.extui %422 : vector<8x2xi1> to vector<8x2xi32>
    %424 = arith.sitofp %423 : vector<8x2xi32> to vector<8x2xf32>
    %cst_157 = arith.constant 0.949999988 : f32
    %425 = vector.broadcast %cst_157 : f32 to vector<8x2xf32>
    %426 = arith.mulf %425, %413 : vector<8x2xf32>
    %427 = arith.addf %426, %420 : vector<8x2xf32>
    %cst_158 = arith.constant 1.000000e+00 : f32
    %428 = vector.broadcast %cst_158 : f32 to vector<8x2xf32>
    %429 = arith.mulf %424, %428 : vector<8x2xf32>
    %430 = arith.subf %427, %429 : vector<8x2xf32>
    %cst_159 = arith.constant 1.000000e+00 : f32
    %431 = vector.broadcast %cst_159 : f32 to vector<8x2xf32>
    %432 = arith.cmpf ogt, %430, %431 : vector<8x2xf32>
    %433 = arith.extui %432 : vector<8x2xi1> to vector<8x2xi32>
    %434 = arith.sitofp %433 : vector<8x2xi32> to vector<8x2xf32>
    %c0_160 = arith.constant 0 : index
    %c4 = arith.constant 4 : index
    %435 = vector.load %arg5[%c0_160, %c4] : memref<8x128xf32, #tpu.memory_space<vmem>>, vector<8x2xf32>
    tpu.vector_store %arg5[%c0_160, %c4], %434 {strides = array<i32>} : memref<8x128xf32, #tpu.memory_space<vmem>>, vector<8x2xf32>,
    %c0_161 = arith.constant 0 : index
    %c44 = arith.constant 44 : index
    %436 = vector.load %arg5[%c0_161, %c44] : memref<8x128xf32, #tpu.memory_space<vmem>>, vector<8x2xf32>
    tpu.vector_store %arg5[%c0_161, %c44], %430 {strides = array<i32>} : memref<8x128xf32, #tpu.memory_space<vmem>>, vector<8x2xf32>,
    %c24 = arith.constant 24 : index
    %c0_162 = arith.constant 0 : index
    %437 = vector.load %arg7[%c24, %c0_162] : memref<160x2xf32, #tpu.memory_space<vmem>>, vector<8x2xf32>
    %cst_163 = arith.constant 1.000000e+00 : f32
    %438 = vector.broadcast %cst_163 : f32 to vector<8x2xf32>
    %439 = arith.cmpf ogt, %430, %438 : vector<8x2xf32>
    %440 = arith.extui %439 : vector<8x2xi1> to vector<8x2xi32>
    %441 = arith.sitofp %440 : vector<8x2xi32> to vector<8x2xf32>
    %cst_164 = arith.constant 0.949999988 : f32
    %442 = vector.broadcast %cst_164 : f32 to vector<8x2xf32>
    %443 = arith.mulf %442, %430 : vector<8x2xf32>
    %444 = arith.addf %443, %437 : vector<8x2xf32>
    %cst_165 = arith.constant 1.000000e+00 : f32
    %445 = vector.broadcast %cst_165 : f32 to vector<8x2xf32>
    %446 = arith.mulf %441, %445 : vector<8x2xf32>
    %447 = arith.subf %444, %446 : vector<8x2xf32>
    %cst_166 = arith.constant 1.000000e+00 : f32
    %448 = vector.broadcast %cst_166 : f32 to vector<8x2xf32>
    %449 = arith.cmpf ogt, %447, %448 : vector<8x2xf32>
    %450 = arith.extui %449 : vector<8x2xi1> to vector<8x2xi32>
    %451 = arith.sitofp %450 : vector<8x2xi32> to vector<8x2xf32>
    %c0_167 = arith.constant 0 : index
    %c6 = arith.constant 6 : index
    %452 = vector.load %arg5[%c0_167, %c6] : memref<8x128xf32, #tpu.memory_space<vmem>>, vector<8x2xf32>
    tpu.vector_store %arg5[%c0_167, %c6], %451 {strides = array<i32>} : memref<8x128xf32, #tpu.memory_space<vmem>>, vector<8x2xf32>,
    %c0_168 = arith.constant 0 : index
    %c46 = arith.constant 46 : index
    %453 = vector.load %arg5[%c0_168, %c46] : memref<8x128xf32, #tpu.memory_space<vmem>>, vector<8x2xf32>
    tpu.vector_store %arg5[%c0_168, %c46], %447 {strides = array<i32>} : memref<8x128xf32, #tpu.memory_space<vmem>>, vector<8x2xf32>,
    %c32 = arith.constant 32 : index
    %c0_169 = arith.constant 0 : index
    %454 = vector.load %arg7[%c32, %c0_169] : memref<160x2xf32, #tpu.memory_space<vmem>>, vector<8x2xf32>
    %cst_170 = arith.constant 1.000000e+00 : f32
    %455 = vector.broadcast %cst_170 : f32 to vector<8x2xf32>
    %456 = arith.cmpf ogt, %447, %455 : vector<8x2xf32>
    %457 = arith.extui %456 : vector<8x2xi1> to vector<8x2xi32>
    %458 = arith.sitofp %457 : vector<8x2xi32> to vector<8x2xf32>
    %cst_171 = arith.constant 0.949999988 : f32
    %459 = vector.broadcast %cst_171 : f32 to vector<8x2xf32>
    %460 = arith.mulf %459, %447 : vector<8x2xf32>
    %461 = arith.addf %460, %454 : vector<8x2xf32>
    %cst_172 = arith.constant 1.000000e+00 : f32
    %462 = vector.broadcast %cst_172 : f32 to vector<8x2xf32>
    %463 = arith.mulf %458, %462 : vector<8x2xf32>
    %464 = arith.subf %461, %463 : vector<8x2xf32>
    %cst_173 = arith.constant 1.000000e+00 : f32
    %465 = vector.broadcast %cst_173 : f32 to vector<8x2xf32>
    %466 = arith.cmpf ogt, %464, %465 : vector<8x2xf32>
    %467 = arith.extui %466 : vector<8x2xi1> to vector<8x2xi32>
    %468 = arith.sitofp %467 : vector<8x2xi32> to vector<8x2xf32>
    %c0_174 = arith.constant 0 : index
    %c8_175 = arith.constant 8 : index
    %469 = vector.load %arg5[%c0_174, %c8_175] : memref<8x128xf32, #tpu.memory_space<vmem>>, vector<8x2xf32>
    tpu.vector_store %arg5[%c0_174, %c8_175], %468 {strides = array<i32>} : memref<8x128xf32, #tpu.memory_space<vmem>>, vector<8x2xf32>,
    %c0_176 = arith.constant 0 : index
    %c48 = arith.constant 48 : index
    %470 = vector.load %arg5[%c0_176, %c48] : memref<8x128xf32, #tpu.memory_space<vmem>>, vector<8x2xf32>
    tpu.vector_store %arg5[%c0_176, %c48], %464 {strides = array<i32>} : memref<8x128xf32, #tpu.memory_space<vmem>>, vector<8x2xf32>,
    %c40_177 = arith.constant 40 : index
    %c0_178 = arith.constant 0 : index
    %471 = vector.load %arg7[%c40_177, %c0_178] : memref<160x2xf32, #tpu.memory_space<vmem>>, vector<8x2xf32>
    %cst_179 = arith.constant 1.000000e+00 : f32
    %472 = vector.broadcast %cst_179 : f32 to vector<8x2xf32>
    %473 = arith.cmpf ogt, %464, %472 : vector<8x2xf32>
    %474 = arith.extui %473 : vector<8x2xi1> to vector<8x2xi32>
    %475 = arith.sitofp %474 : vector<8x2xi32> to vector<8x2xf32>
    %cst_180 = arith.constant 0.949999988 : f32
    %476 = vector.broadcast %cst_180 : f32 to vector<8x2xf32>
    %477 = arith.mulf %476, %464 : vector<8x2xf32>
    %478 = arith.addf %477, %471 : vector<8x2xf32>
    %cst_181 = arith.constant 1.000000e+00 : f32
    %479 = vector.broadcast %cst_181 : f32 to vector<8x2xf32>
    %480 = arith.mulf %475, %479 : vector<8x2xf32>
    %481 = arith.subf %478, %480 : vector<8x2xf32>
    %cst_182 = arith.constant 1.000000e+00 : f32
    %482 = vector.broadcast %cst_182 : f32 to vector<8x2xf32>
    %483 = arith.cmpf ogt, %481, %482 : vector<8x2xf32>
    %484 = arith.extui %483 : vector<8x2xi1> to vector<8x2xi32>
    %485 = arith.sitofp %484 : vector<8x2xi32> to vector<8x2xf32>
    %c0_183 = arith.constant 0 : index
    %c10 = arith.constant 10 : index
    %486 = vector.load %arg5[%c0_183, %c10] : memref<8x128xf32, #tpu.memory_space<vmem>>, vector<8x2xf32>
    tpu.vector_store %arg5[%c0_183, %c10], %485 {strides = array<i32>} : memref<8x128xf32, #tpu.memory_space<vmem>>, vector<8x2xf32>,
    %c0_184 = arith.constant 0 : index
    %c50 = arith.constant 50 : index
    %487 = vector.load %arg5[%c0_184, %c50] : memref<8x128xf32, #tpu.memory_space<vmem>>, vector<8x2xf32>
    tpu.vector_store %arg5[%c0_184, %c50], %481 {strides = array<i32>} : memref<8x128xf32, #tpu.memory_space<vmem>>, vector<8x2xf32>,
    %c48_185 = arith.constant 48 : index
    %c0_186 = arith.constant 0 : index
    %488 = vector.load %arg7[%c48_185, %c0_186] : memref<160x2xf32, #tpu.memory_space<vmem>>, vector<8x2xf32>
    %cst_187 = arith.constant 1.000000e+00 : f32
    %489 = vector.broadcast %cst_187 : f32 to vector<8x2xf32>
    %490 = arith.cmpf ogt, %481, %489 : vector<8x2xf32>
    %491 = arith.extui %490 : vector<8x2xi1> to vector<8x2xi32>
    %492 = arith.sitofp %491 : vector<8x2xi32> to vector<8x2xf32>
    %cst_188 = arith.constant 0.949999988 : f32
    %493 = vector.broadcast %cst_188 : f32 to vector<8x2xf32>
    %494 = arith.mulf %493, %481 : vector<8x2xf32>
    %495 = arith.addf %494, %488 : vector<8x2xf32>
    %cst_189 = arith.constant 1.000000e+00 : f32
    %496 = vector.broadcast %cst_189 : f32 to vector<8x2xf32>
    %497 = arith.mulf %492, %496 : vector<8x2xf32>
    %498 = arith.subf %495, %497 : vector<8x2xf32>
    %cst_190 = arith.constant 1.000000e+00 : f32
    %499 = vector.broadcast %cst_190 : f32 to vector<8x2xf32>
    %500 = arith.cmpf ogt, %498, %499 : vector<8x2xf32>
    %501 = arith.extui %500 : vector<8x2xi1> to vector<8x2xi32>
    %502 = arith.sitofp %501 : vector<8x2xi32> to vector<8x2xf32>
    %c0_191 = arith.constant 0 : index
    %c12 = arith.constant 12 : index
    %503 = vector.load %arg5[%c0_191, %c12] : memref<8x128xf32, #tpu.memory_space<vmem>>, vector<8x2xf32>
    tpu.vector_store %arg5[%c0_191, %c12], %502 {strides = array<i32>} : memref<8x128xf32, #tpu.memory_space<vmem>>, vector<8x2xf32>,
    %c0_192 = arith.constant 0 : index
    %c52 = arith.constant 52 : index
    %504 = vector.load %arg5[%c0_192, %c52] : memref<8x128xf32, #tpu.memory_space<vmem>>, vector<8x2xf32>
    tpu.vector_store %arg5[%c0_192, %c52], %498 {strides = array<i32>} : memref<8x128xf32, #tpu.memory_space<vmem>>, vector<8x2xf32>,
    %c56 = arith.constant 56 : index
    %c0_193 = arith.constant 0 : index
    %505 = vector.load %arg7[%c56, %c0_193] : memref<160x2xf32, #tpu.memory_space<vmem>>, vector<8x2xf32>
    %cst_194 = arith.constant 1.000000e+00 : f32
    %506 = vector.broadcast %cst_194 : f32 to vector<8x2xf32>
    %507 = arith.cmpf ogt, %498, %506 : vector<8x2xf32>
    %508 = arith.extui %507 : vector<8x2xi1> to vector<8x2xi32>
    %509 = arith.sitofp %508 : vector<8x2xi32> to vector<8x2xf32>
    %cst_195 = arith.constant 0.949999988 : f32
    %510 = vector.broadcast %cst_195 : f32 to vector<8x2xf32>
    %511 = arith.mulf %510, %498 : vector<8x2xf32>
    %512 = arith.addf %511, %505 : vector<8x2xf32>
    %cst_196 = arith.constant 1.000000e+00 : f32
    %513 = vector.broadcast %cst_196 : f32 to vector<8x2xf32>
    %514 = arith.mulf %509, %513 : vector<8x2xf32>
    %515 = arith.subf %512, %514 : vector<8x2xf32>
    %cst_197 = arith.constant 1.000000e+00 : f32
    %516 = vector.broadcast %cst_197 : f32 to vector<8x2xf32>
    %517 = arith.cmpf ogt, %515, %516 : vector<8x2xf32>
    %518 = arith.extui %517 : vector<8x2xi1> to vector<8x2xi32>
    %519 = arith.sitofp %518 : vector<8x2xi32> to vector<8x2xf32>
    %c0_198 = arith.constant 0 : index
    %c14 = arith.constant 14 : index
    %520 = vector.load %arg5[%c0_198, %c14] : memref<8x128xf32, #tpu.memory_space<vmem>>, vector<8x2xf32>
    tpu.vector_store %arg5[%c0_198, %c14], %519 {strides = array<i32>} : memref<8x128xf32, #tpu.memory_space<vmem>>, vector<8x2xf32>,
    %c0_199 = arith.constant 0 : index
    %c54 = arith.constant 54 : index
    %521 = vector.load %arg5[%c0_199, %c54] : memref<8x128xf32, #tpu.memory_space<vmem>>, vector<8x2xf32>
    tpu.vector_store %arg5[%c0_199, %c54], %515 {strides = array<i32>} : memref<8x128xf32, #tpu.memory_space<vmem>>, vector<8x2xf32>,
    %c64 = arith.constant 64 : index
    %c0_200 = arith.constant 0 : index
    %522 = vector.load %arg7[%c64, %c0_200] : memref<160x2xf32, #tpu.memory_space<vmem>>, vector<8x2xf32>
    %cst_201 = arith.constant 1.000000e+00 : f32
    %523 = vector.broadcast %cst_201 : f32 to vector<8x2xf32>
    %524 = arith.cmpf ogt, %515, %523 : vector<8x2xf32>
    %525 = arith.extui %524 : vector<8x2xi1> to vector<8x2xi32>
    %526 = arith.sitofp %525 : vector<8x2xi32> to vector<8x2xf32>
    %cst_202 = arith.constant 0.949999988 : f32
    %527 = vector.broadcast %cst_202 : f32 to vector<8x2xf32>
    %528 = arith.mulf %527, %515 : vector<8x2xf32>
    %529 = arith.addf %528, %522 : vector<8x2xf32>
    %cst_203 = arith.constant 1.000000e+00 : f32
    %530 = vector.broadcast %cst_203 : f32 to vector<8x2xf32>
    %531 = arith.mulf %526, %530 : vector<8x2xf32>
    %532 = arith.subf %529, %531 : vector<8x2xf32>
    %cst_204 = arith.constant 1.000000e+00 : f32
    %533 = vector.broadcast %cst_204 : f32 to vector<8x2xf32>
    %534 = arith.cmpf ogt, %532, %533 : vector<8x2xf32>
    %535 = arith.extui %534 : vector<8x2xi1> to vector<8x2xi32>
    %536 = arith.sitofp %535 : vector<8x2xi32> to vector<8x2xf32>
    %c0_205 = arith.constant 0 : index
    %c16_206 = arith.constant 16 : index
    %537 = vector.load %arg5[%c0_205, %c16_206] : memref<8x128xf32, #tpu.memory_space<vmem>>, vector<8x2xf32>
    tpu.vector_store %arg5[%c0_205, %c16_206], %536 {strides = array<i32>} : memref<8x128xf32, #tpu.memory_space<vmem>>, vector<8x2xf32>,
    %c0_207 = arith.constant 0 : index
    %c56_208 = arith.constant 56 : index
    %538 = vector.load %arg5[%c0_207, %c56_208] : memref<8x128xf32, #tpu.memory_space<vmem>>, vector<8x2xf32>
    tpu.vector_store %arg5[%c0_207, %c56_208], %532 {strides = array<i32>} : memref<8x128xf32, #tpu.memory_space<vmem>>, vector<8x2xf32>,
    %c72 = arith.constant 72 : index
    %c0_209 = arith.constant 0 : index
    %539 = vector.load %arg7[%c72, %c0_209] : memref<160x2xf32, #tpu.memory_space<vmem>>, vector<8x2xf32>
    %cst_210 = arith.constant 1.000000e+00 : f32
    %540 = vector.broadcast %cst_210 : f32 to vector<8x2xf32>
    %541 = arith.cmpf ogt, %532, %540 : vector<8x2xf32>
    %542 = arith.extui %541 : vector<8x2xi1> to vector<8x2xi32>
    %543 = arith.sitofp %542 : vector<8x2xi32> to vector<8x2xf32>
    %cst_211 = arith.constant 0.949999988 : f32
    %544 = vector.broadcast %cst_211 : f32 to vector<8x2xf32>
    %545 = arith.mulf %544, %532 : vector<8x2xf32>
    %546 = arith.addf %545, %539 : vector<8x2xf32>
    %cst_212 = arith.constant 1.000000e+00 : f32
    %547 = vector.broadcast %cst_212 : f32 to vector<8x2xf32>
    %548 = arith.mulf %543, %547 : vector<8x2xf32>
    %549 = arith.subf %546, %548 : vector<8x2xf32>
    %cst_213 = arith.constant 1.000000e+00 : f32
    %550 = vector.broadcast %cst_213 : f32 to vector<8x2xf32>
    %551 = arith.cmpf ogt, %549, %550 : vector<8x2xf32>
    %552 = arith.extui %551 : vector<8x2xi1> to vector<8x2xi32>
    %553 = arith.sitofp %552 : vector<8x2xi32> to vector<8x2xf32>
    %c0_214 = arith.constant 0 : index
    %c18 = arith.constant 18 : index
    %554 = vector.load %arg5[%c0_214, %c18] : memref<8x128xf32, #tpu.memory_space<vmem>>, vector<8x2xf32>
    tpu.vector_store %arg5[%c0_214, %c18], %553 {strides = array<i32>} : memref<8x128xf32, #tpu.memory_space<vmem>>, vector<8x2xf32>,
    %c0_215 = arith.constant 0 : index
    %c58 = arith.constant 58 : index
    %555 = vector.load %arg5[%c0_215, %c58] : memref<8x128xf32, #tpu.memory_space<vmem>>, vector<8x2xf32>
    tpu.vector_store %arg5[%c0_215, %c58], %549 {strides = array<i32>} : memref<8x128xf32, #tpu.memory_space<vmem>>, vector<8x2xf32>,
    %c80 = arith.constant 80 : index
    %c0_216 = arith.constant 0 : index
    %556 = vector.load %arg7[%c80, %c0_216] : memref<160x2xf32, #tpu.memory_space<vmem>>, vector<8x2xf32>
    %cst_217 = arith.constant 1.000000e+00 : f32
    %557 = vector.broadcast %cst_217 : f32 to vector<8x2xf32>
    %558 = arith.cmpf ogt, %549, %557 : vector<8x2xf32>
    %559 = arith.extui %558 : vector<8x2xi1> to vector<8x2xi32>
    %560 = arith.sitofp %559 : vector<8x2xi32> to vector<8x2xf32>
    %cst_218 = arith.constant 0.949999988 : f32
    %561 = vector.broadcast %cst_218 : f32 to vector<8x2xf32>
    %562 = arith.mulf %561, %549 : vector<8x2xf32>
    %563 = arith.addf %562, %556 : vector<8x2xf32>
    %cst_219 = arith.constant 1.000000e+00 : f32
    %564 = vector.broadcast %cst_219 : f32 to vector<8x2xf32>
    %565 = arith.mulf %560, %564 : vector<8x2xf32>
    %566 = arith.subf %563, %565 : vector<8x2xf32>
    %cst_220 = arith.constant 1.000000e+00 : f32
    %567 = vector.broadcast %cst_220 : f32 to vector<8x2xf32>
    %568 = arith.cmpf ogt, %566, %567 : vector<8x2xf32>
    %569 = arith.extui %568 : vector<8x2xi1> to vector<8x2xi32>
    %570 = arith.sitofp %569 : vector<8x2xi32> to vector<8x2xf32>
    %c0_221 = arith.constant 0 : index
    %c20 = arith.constant 20 : index
    %571 = vector.load %arg5[%c0_221, %c20] : memref<8x128xf32, #tpu.memory_space<vmem>>, vector<8x2xf32>
    tpu.vector_store %arg5[%c0_221, %c20], %570 {strides = array<i32>} : memref<8x128xf32, #tpu.memory_space<vmem>>, vector<8x2xf32>,
    %c0_222 = arith.constant 0 : index
    %c60 = arith.constant 60 : index
    %572 = vector.load %arg5[%c0_222, %c60] : memref<8x128xf32, #tpu.memory_space<vmem>>, vector<8x2xf32>
    tpu.vector_store %arg5[%c0_222, %c60], %566 {strides = array<i32>} : memref<8x128xf32, #tpu.memory_space<vmem>>, vector<8x2xf32>,
    %c88 = arith.constant 88 : index
    %c0_223 = arith.constant 0 : index
    %573 = vector.load %arg7[%c88, %c0_223] : memref<160x2xf32, #tpu.memory_space<vmem>>, vector<8x2xf32>
    %cst_224 = arith.constant 1.000000e+00 : f32
    %574 = vector.broadcast %cst_224 : f32 to vector<8x2xf32>
    %575 = arith.cmpf ogt, %566, %574 : vector<8x2xf32>
    %576 = arith.extui %575 : vector<8x2xi1> to vector<8x2xi32>
    %577 = arith.sitofp %576 : vector<8x2xi32> to vector<8x2xf32>
    %cst_225 = arith.constant 0.949999988 : f32
    %578 = vector.broadcast %cst_225 : f32 to vector<8x2xf32>
    %579 = arith.mulf %578, %566 : vector<8x2xf32>
    %580 = arith.addf %579, %573 : vector<8x2xf32>
    %cst_226 = arith.constant 1.000000e+00 : f32
    %581 = vector.broadcast %cst_226 : f32 to vector<8x2xf32>
    %582 = arith.mulf %577, %581 : vector<8x2xf32>
    %583 = arith.subf %580, %582 : vector<8x2xf32>
    %cst_227 = arith.constant 1.000000e+00 : f32
    %584 = vector.broadcast %cst_227 : f32 to vector<8x2xf32>
    %585 = arith.cmpf ogt, %583, %584 : vector<8x2xf32>
    %586 = arith.extui %585 : vector<8x2xi1> to vector<8x2xi32>
    %587 = arith.sitofp %586 : vector<8x2xi32> to vector<8x2xf32>
    %c0_228 = arith.constant 0 : index
    %c22 = arith.constant 22 : index
    %588 = vector.load %arg5[%c0_228, %c22] : memref<8x128xf32, #tpu.memory_space<vmem>>, vector<8x2xf32>
    tpu.vector_store %arg5[%c0_228, %c22], %587 {strides = array<i32>} : memref<8x128xf32, #tpu.memory_space<vmem>>, vector<8x2xf32>,
    %c0_229 = arith.constant 0 : index
    %c62 = arith.constant 62 : index
    %589 = vector.load %arg5[%c0_229, %c62] : memref<8x128xf32, #tpu.memory_space<vmem>>, vector<8x2xf32>
    tpu.vector_store %arg5[%c0_229, %c62], %583 {strides = array<i32>} : memref<8x128xf32, #tpu.memory_space<vmem>>, vector<8x2xf32>,
    %c96 = arith.constant 96 : index
    %c0_230 = arith.constant 0 : index
    %590 = vector.load %arg7[%c96, %c0_230] : memref<160x2xf32, #tpu.memory_space<vmem>>, vector<8x2xf32>
    %cst_231 = arith.constant 1.000000e+00 : f32
    %591 = vector.broadcast %cst_231 : f32 to vector<8x2xf32>
    %592 = arith.cmpf ogt, %583, %591 : vector<8x2xf32>
    %593 = arith.extui %592 : vector<8x2xi1> to vector<8x2xi32>
    %594 = arith.sitofp %593 : vector<8x2xi32> to vector<8x2xf32>
    %cst_232 = arith.constant 0.949999988 : f32
    %595 = vector.broadcast %cst_232 : f32 to vector<8x2xf32>
    %596 = arith.mulf %595, %583 : vector<8x2xf32>
    %597 = arith.addf %596, %590 : vector<8x2xf32>
    %cst_233 = arith.constant 1.000000e+00 : f32
    %598 = vector.broadcast %cst_233 : f32 to vector<8x2xf32>
    %599 = arith.mulf %594, %598 : vector<8x2xf32>
    %600 = arith.subf %597, %599 : vector<8x2xf32>
    %cst_234 = arith.constant 1.000000e+00 : f32
    %601 = vector.broadcast %cst_234 : f32 to vector<8x2xf32>
    %602 = arith.cmpf ogt, %600, %601 : vector<8x2xf32>
    %603 = arith.extui %602 : vector<8x2xi1> to vector<8x2xi32>
    %604 = arith.sitofp %603 : vector<8x2xi32> to vector<8x2xf32>
    %c0_235 = arith.constant 0 : index
    %c24_236 = arith.constant 24 : index
    %605 = vector.load %arg5[%c0_235, %c24_236] : memref<8x128xf32, #tpu.memory_space<vmem>>, vector<8x2xf32>
    tpu.vector_store %arg5[%c0_235, %c24_236], %604 {strides = array<i32>} : memref<8x128xf32, #tpu.memory_space<vmem>>, vector<8x2xf32>,
    %c0_237 = arith.constant 0 : index
    %c64_238 = arith.constant 64 : index
    %606 = vector.load %arg5[%c0_237, %c64_238] : memref<8x128xf32, #tpu.memory_space<vmem>>, vector<8x2xf32>
    tpu.vector_store %arg5[%c0_237, %c64_238], %600 {strides = array<i32>} : memref<8x128xf32, #tpu.memory_space<vmem>>, vector<8x2xf32>,
    %c104 = arith.constant 104 : index
    %c0_239 = arith.constant 0 : index
    %607 = vector.load %arg7[%c104, %c0_239] : memref<160x2xf32, #tpu.memory_space<vmem>>, vector<8x2xf32>
    %cst_240 = arith.constant 1.000000e+00 : f32
    %608 = vector.broadcast %cst_240 : f32 to vector<8x2xf32>
    %609 = arith.cmpf ogt, %600, %608 : vector<8x2xf32>
    %610 = arith.extui %609 : vector<8x2xi1> to vector<8x2xi32>
    %611 = arith.sitofp %610 : vector<8x2xi32> to vector<8x2xf32>
    %cst_241 = arith.constant 0.949999988 : f32
    %612 = vector.broadcast %cst_241 : f32 to vector<8x2xf32>
    %613 = arith.mulf %612, %600 : vector<8x2xf32>
    %614 = arith.addf %613, %607 : vector<8x2xf32>
    %cst_242 = arith.constant 1.000000e+00 : f32
    %615 = vector.broadcast %cst_242 : f32 to vector<8x2xf32>
    %616 = arith.mulf %611, %615 : vector<8x2xf32>
    %617 = arith.subf %614, %616 : vector<8x2xf32>
    %cst_243 = arith.constant 1.000000e+00 : f32
    %618 = vector.broadcast %cst_243 : f32 to vector<8x2xf32>
    %619 = arith.cmpf ogt, %617, %618 : vector<8x2xf32>
    %620 = arith.extui %619 : vector<8x2xi1> to vector<8x2xi32>
    %621 = arith.sitofp %620 : vector<8x2xi32> to vector<8x2xf32>
    %c0_244 = arith.constant 0 : index
    %c26 = arith.constant 26 : index
    %622 = vector.load %arg5[%c0_244, %c26] : memref<8x128xf32, #tpu.memory_space<vmem>>, vector<8x2xf32>
    tpu.vector_store %arg5[%c0_244, %c26], %621 {strides = array<i32>} : memref<8x128xf32, #tpu.memory_space<vmem>>, vector<8x2xf32>,
    %c0_245 = arith.constant 0 : index
    %c66 = arith.constant 66 : index
    %623 = vector.load %arg5[%c0_245, %c66] : memref<8x128xf32, #tpu.memory_space<vmem>>, vector<8x2xf32>
    tpu.vector_store %arg5[%c0_245, %c66], %617 {strides = array<i32>} : memref<8x128xf32, #tpu.memory_space<vmem>>, vector<8x2xf32>,
    %c112 = arith.constant 112 : index
    %c0_246 = arith.constant 0 : index
    %624 = vector.load %arg7[%c112, %c0_246] : memref<160x2xf32, #tpu.memory_space<vmem>>, vector<8x2xf32>
    %cst_247 = arith.constant 1.000000e+00 : f32
    %625 = vector.broadcast %cst_247 : f32 to vector<8x2xf32>
    %626 = arith.cmpf ogt, %617, %625 : vector<8x2xf32>
    %627 = arith.extui %626 : vector<8x2xi1> to vector<8x2xi32>
    %628 = arith.sitofp %627 : vector<8x2xi32> to vector<8x2xf32>
    %cst_248 = arith.constant 0.949999988 : f32
    %629 = vector.broadcast %cst_248 : f32 to vector<8x2xf32>
    %630 = arith.mulf %629, %617 : vector<8x2xf32>
    %631 = arith.addf %630, %624 : vector<8x2xf32>
    %cst_249 = arith.constant 1.000000e+00 : f32
    %632 = vector.broadcast %cst_249 : f32 to vector<8x2xf32>
    %633 = arith.mulf %628, %632 : vector<8x2xf32>
    %634 = arith.subf %631, %633 : vector<8x2xf32>
    %cst_250 = arith.constant 1.000000e+00 : f32
    %635 = vector.broadcast %cst_250 : f32 to vector<8x2xf32>
    %636 = arith.cmpf ogt, %634, %635 : vector<8x2xf32>
    %637 = arith.extui %636 : vector<8x2xi1> to vector<8x2xi32>
    %638 = arith.sitofp %637 : vector<8x2xi32> to vector<8x2xf32>
    %c0_251 = arith.constant 0 : index
    %c28 = arith.constant 28 : index
    %639 = vector.load %arg5[%c0_251, %c28] : memref<8x128xf32, #tpu.memory_space<vmem>>, vector<8x2xf32>
    tpu.vector_store %arg5[%c0_251, %c28], %638 {strides = array<i32>} : memref<8x128xf32, #tpu.memory_space<vmem>>, vector<8x2xf32>,
    %c0_252 = arith.constant 0 : index
    %c68 = arith.constant 68 : index
    %640 = vector.load %arg5[%c0_252, %c68] : memref<8x128xf32, #tpu.memory_space<vmem>>, vector<8x2xf32>
    tpu.vector_store %arg5[%c0_252, %c68], %634 {strides = array<i32>} : memref<8x128xf32, #tpu.memory_space<vmem>>, vector<8x2xf32>,
    %c120 = arith.constant 120 : index
    %c0_253 = arith.constant 0 : index
    %641 = vector.load %arg7[%c120, %c0_253] : memref<160x2xf32, #tpu.memory_space<vmem>>, vector<8x2xf32>
    %cst_254 = arith.constant 1.000000e+00 : f32
    %642 = vector.broadcast %cst_254 : f32 to vector<8x2xf32>
    %643 = arith.cmpf ogt, %634, %642 : vector<8x2xf32>
    %644 = arith.extui %643 : vector<8x2xi1> to vector<8x2xi32>
    %645 = arith.sitofp %644 : vector<8x2xi32> to vector<8x2xf32>
    %cst_255 = arith.constant 0.949999988 : f32
    %646 = vector.broadcast %cst_255 : f32 to vector<8x2xf32>
    %647 = arith.mulf %646, %634 : vector<8x2xf32>
    %648 = arith.addf %647, %641 : vector<8x2xf32>
    %cst_256 = arith.constant 1.000000e+00 : f32
    %649 = vector.broadcast %cst_256 : f32 to vector<8x2xf32>
    %650 = arith.mulf %645, %649 : vector<8x2xf32>
    %651 = arith.subf %648, %650 : vector<8x2xf32>
    %cst_257 = arith.constant 1.000000e+00 : f32
    %652 = vector.broadcast %cst_257 : f32 to vector<8x2xf32>
    %653 = arith.cmpf ogt, %651, %652 : vector<8x2xf32>
    %654 = arith.extui %653 : vector<8x2xi1> to vector<8x2xi32>
    %655 = arith.sitofp %654 : vector<8x2xi32> to vector<8x2xf32>
    %c0_258 = arith.constant 0 : index
    %c30 = arith.constant 30 : index
    %656 = vector.load %arg5[%c0_258, %c30] : memref<8x128xf32, #tpu.memory_space<vmem>>, vector<8x2xf32>
    tpu.vector_store %arg5[%c0_258, %c30], %655 {strides = array<i32>} : memref<8x128xf32, #tpu.memory_space<vmem>>, vector<8x2xf32>,
    %c0_259 = arith.constant 0 : index
    %c70 = arith.constant 70 : index
    %657 = vector.load %arg5[%c0_259, %c70] : memref<8x128xf32, #tpu.memory_space<vmem>>, vector<8x2xf32>
    tpu.vector_store %arg5[%c0_259, %c70], %651 {strides = array<i32>} : memref<8x128xf32, #tpu.memory_space<vmem>>, vector<8x2xf32>,
    %c128 = arith.constant 128 : index
    %c0_260 = arith.constant 0 : index
    %658 = vector.load %arg7[%c128, %c0_260] : memref<160x2xf32, #tpu.memory_space<vmem>>, vector<8x2xf32>
    %cst_261 = arith.constant 1.000000e+00 : f32
    %659 = vector.broadcast %cst_261 : f32 to vector<8x2xf32>
    %660 = arith.cmpf ogt, %651, %659 : vector<8x2xf32>
    %661 = arith.extui %660 : vector<8x2xi1> to vector<8x2xi32>
    %662 = arith.sitofp %661 : vector<8x2xi32> to vector<8x2xf32>
    %cst_262 = arith.constant 0.949999988 : f32
    %663 = vector.broadcast %cst_262 : f32 to vector<8x2xf32>
    %664 = arith.mulf %663, %651 : vector<8x2xf32>
    %665 = arith.addf %664, %658 : vector<8x2xf32>
    %cst_263 = arith.constant 1.000000e+00 : f32
    %666 = vector.broadcast %cst_263 : f32 to vector<8x2xf32>
    %667 = arith.mulf %662, %666 : vector<8x2xf32>
    %668 = arith.subf %665, %667 : vector<8x2xf32>
    %cst_264 = arith.constant 1.000000e+00 : f32
    %669 = vector.broadcast %cst_264 : f32 to vector<8x2xf32>
    %670 = arith.cmpf ogt, %668, %669 : vector<8x2xf32>
    %671 = arith.extui %670 : vector<8x2xi1> to vector<8x2xi32>
    %672 = arith.sitofp %671 : vector<8x2xi32> to vector<8x2xf32>
    %c0_265 = arith.constant 0 : index
    %c32_266 = arith.constant 32 : index
    %673 = vector.load %arg5[%c0_265, %c32_266] : memref<8x128xf32, #tpu.memory_space<vmem>>, vector<8x2xf32>
    tpu.vector_store %arg5[%c0_265, %c32_266], %672 {strides = array<i32>} : memref<8x128xf32, #tpu.memory_space<vmem>>, vector<8x2xf32>,
    %c0_267 = arith.constant 0 : index
    %c72_268 = arith.constant 72 : index
    %674 = vector.load %arg5[%c0_267, %c72_268] : memref<8x128xf32, #tpu.memory_space<vmem>>, vector<8x2xf32>
    tpu.vector_store %arg5[%c0_267, %c72_268], %668 {strides = array<i32>} : memref<8x128xf32, #tpu.memory_space<vmem>>, vector<8x2xf32>,
    %c136 = arith.constant 136 : index
    %c0_269 = arith.constant 0 : index
    %675 = vector.load %arg7[%c136, %c0_269] : memref<160x2xf32, #tpu.memory_space<vmem>>, vector<8x2xf32>
    %cst_270 = arith.constant 1.000000e+00 : f32
    %676 = vector.broadcast %cst_270 : f32 to vector<8x2xf32>
    %677 = arith.cmpf ogt, %668, %676 : vector<8x2xf32>
    %678 = arith.extui %677 : vector<8x2xi1> to vector<8x2xi32>
    %679 = arith.sitofp %678 : vector<8x2xi32> to vector<8x2xf32>
    %cst_271 = arith.constant 0.949999988 : f32
    %680 = vector.broadcast %cst_271 : f32 to vector<8x2xf32>
    %681 = arith.mulf %680, %668 : vector<8x2xf32>
    %682 = arith.addf %681, %675 : vector<8x2xf32>
    %cst_272 = arith.constant 1.000000e+00 : f32
    %683 = vector.broadcast %cst_272 : f32 to vector<8x2xf32>
    %684 = arith.mulf %679, %683 : vector<8x2xf32>
    %685 = arith.subf %682, %684 : vector<8x2xf32>
    %cst_273 = arith.constant 1.000000e+00 : f32
    %686 = vector.broadcast %cst_273 : f32 to vector<8x2xf32>
    %687 = arith.cmpf ogt, %685, %686 : vector<8x2xf32>
    %688 = arith.extui %687 : vector<8x2xi1> to vector<8x2xi32>
    %689 = arith.sitofp %688 : vector<8x2xi32> to vector<8x2xf32>
    %c0_274 = arith.constant 0 : index
    %c34 = arith.constant 34 : index
    %690 = vector.load %arg5[%c0_274, %c34] : memref<8x128xf32, #tpu.memory_space<vmem>>, vector<8x2xf32>
    tpu.vector_store %arg5[%c0_274, %c34], %689 {strides = array<i32>} : memref<8x128xf32, #tpu.memory_space<vmem>>, vector<8x2xf32>,
    %c0_275 = arith.constant 0 : index
    %c74 = arith.constant 74 : index
    %691 = vector.load %arg5[%c0_275, %c74] : memref<8x128xf32, #tpu.memory_space<vmem>>, vector<8x2xf32>
    tpu.vector_store %arg5[%c0_275, %c74], %685 {strides = array<i32>} : memref<8x128xf32, #tpu.memory_space<vmem>>, vector<8x2xf32>,
    %c144 = arith.constant 144 : index
    %c0_276 = arith.constant 0 : index
    %692 = vector.load %arg7[%c144, %c0_276] : memref<160x2xf32, #tpu.memory_space<vmem>>, vector<8x2xf32>
    %cst_277 = arith.constant 1.000000e+00 : f32
    %693 = vector.broadcast %cst_277 : f32 to vector<8x2xf32>
    %694 = arith.cmpf ogt, %685, %693 : vector<8x2xf32>
    %695 = arith.extui %694 : vector<8x2xi1> to vector<8x2xi32>
    %696 = arith.sitofp %695 : vector<8x2xi32> to vector<8x2xf32>
    %cst_278 = arith.constant 0.949999988 : f32
    %697 = vector.broadcast %cst_278 : f32 to vector<8x2xf32>
    %698 = arith.mulf %697, %685 : vector<8x2xf32>
    %699 = arith.addf %698, %692 : vector<8x2xf32>
    %cst_279 = arith.constant 1.000000e+00 : f32
    %700 = vector.broadcast %cst_279 : f32 to vector<8x2xf32>
    %701 = arith.mulf %696, %700 : vector<8x2xf32>
    %702 = arith.subf %699, %701 : vector<8x2xf32>
    %cst_280 = arith.constant 1.000000e+00 : f32
    %703 = vector.broadcast %cst_280 : f32 to vector<8x2xf32>
    %704 = arith.cmpf ogt, %702, %703 : vector<8x2xf32>
    %705 = arith.extui %704 : vector<8x2xi1> to vector<8x2xi32>
    %706 = arith.sitofp %705 : vector<8x2xi32> to vector<8x2xf32>
    %c0_281 = arith.constant 0 : index
    %c36 = arith.constant 36 : index
    %707 = vector.load %arg5[%c0_281, %c36] : memref<8x128xf32, #tpu.memory_space<vmem>>, vector<8x2xf32>
    tpu.vector_store %arg5[%c0_281, %c36], %706 {strides = array<i32>} : memref<8x128xf32, #tpu.memory_space<vmem>>, vector<8x2xf32>,
    %c0_282 = arith.constant 0 : index
    %c76 = arith.constant 76 : index
    %708 = vector.load %arg5[%c0_282, %c76] : memref<8x128xf32, #tpu.memory_space<vmem>>, vector<8x2xf32>
    tpu.vector_store %arg5[%c0_282, %c76], %702 {strides = array<i32>} : memref<8x128xf32, #tpu.memory_space<vmem>>, vector<8x2xf32>,
    %c152 = arith.constant 152 : index
    %c0_283 = arith.constant 0 : index
    %709 = vector.load %arg7[%c152, %c0_283] : memref<160x2xf32, #tpu.memory_space<vmem>>, vector<8x2xf32>
    %cst_284 = arith.constant 1.000000e+00 : f32
    %710 = vector.broadcast %cst_284 : f32 to vector<8x2xf32>
    %711 = arith.cmpf ogt, %702, %710 : vector<8x2xf32>
    %712 = arith.extui %711 : vector<8x2xi1> to vector<8x2xi32>
    %713 = arith.sitofp %712 : vector<8x2xi32> to vector<8x2xf32>
    %cst_285 = arith.constant 0.949999988 : f32
    %714 = vector.broadcast %cst_285 : f32 to vector<8x2xf32>
    %715 = arith.mulf %714, %702 : vector<8x2xf32>
    %716 = arith.addf %715, %709 : vector<8x2xf32>
    %cst_286 = arith.constant 1.000000e+00 : f32
    %717 = vector.broadcast %cst_286 : f32 to vector<8x2xf32>
    %718 = arith.mulf %713, %717 : vector<8x2xf32>
    %719 = arith.subf %716, %718 : vector<8x2xf32>
    %cst_287 = arith.constant 1.000000e+00 : f32
    %720 = vector.broadcast %cst_287 : f32 to vector<8x2xf32>
    %721 = arith.cmpf ogt, %719, %720 : vector<8x2xf32>
    %722 = arith.extui %721 : vector<8x2xi1> to vector<8x2xi32>
    %723 = arith.sitofp %722 : vector<8x2xi32> to vector<8x2xf32>
    %c0_288 = arith.constant 0 : index
    %c38 = arith.constant 38 : index
    %724 = vector.load %arg5[%c0_288, %c38] : memref<8x128xf32, #tpu.memory_space<vmem>>, vector<8x2xf32>
    tpu.vector_store %arg5[%c0_288, %c38], %723 {strides = array<i32>} : memref<8x128xf32, #tpu.memory_space<vmem>>, vector<8x2xf32>,
    %c0_289 = arith.constant 0 : index
    %c78 = arith.constant 78 : index
    %725 = vector.load %arg5[%c0_289, %c78] : memref<8x128xf32, #tpu.memory_space<vmem>>, vector<8x2xf32>
    tpu.vector_store %arg5[%c0_289, %c78], %719 {strides = array<i32>} : memref<8x128xf32, #tpu.memory_space<vmem>>, vector<8x2xf32>,
    return
  }
}

</mosaic_0001>

<llo_original>
// kernel: trafficnet_forward.1
$region0: #{trafficnet_forward.1}
  #allocation0 [shape = 'u32[]', space=smem, size = 0x4, offset = 0x4, fixed_abs, tag = 'smem constant byte address 0x4 - core index']
  #allocation1 [shape = 'u32[144,128]{1,0:T(1,128)}', space=vmem, size = 0x12000, scoped, tag = 'internal scratch']
  #allocation2 [shape = 'f32[160,64]{1,0:T(8,128)}', space=vmem, size = 0x14000, scoped, tag = 'scratch operand']
  #allocation3 [shape = 'f32[160,2]{1,0:T(8,128)}', space=vmem, size = 0x14000, scoped, tag = 'scratch operand']
  %s0 = inlined_call_operand.vmem [shape: f32[8,2], index: 0, kind: input, shape index: {}]
  %s1 = inlined_call_operand.vmem [shape: f32[2,64], index: 1, kind: input, shape index: {}]
  %s2 = inlined_call_operand.vmem [shape: f32[1,64], index: 2, kind: input, shape index: {}]
  %s3 = inlined_call_operand.vmem [shape: f32[64,2], index: 3, kind: input, shape index: {}]
  %s4 = inlined_call_operand.vmem [shape: f32[1,2], index: 4, kind: input, shape index: {}]
  %s5 = inlined_call_operand.vmem [shape: f32[8,128], index: 5, kind: output, shape index: {}]
  %s6 = sld [smem:[#allocation0]]
  $region30: #{trafficnet_forward.1} parent=0
    _
  %s8 = ssub.s32 1, %s6
  %s9 = scalar_select 0, %s8, %s6
  // Predicated region
  $region2: #{trafficnet_forward.1} parent=0 // pred_check
    _
  $region3: #{trafficnet_forward.1} parent=0 // pred_check_branch
    %11 = sbr.rel (0) target = $region5
  $region4: #{trafficnet_forward.1} parent=0 // pred_region
    _
  $region5: #{trafficnet_forward.1} parent=0 // pred_fallthru
    _
  // Predicated region
  $region6: #{trafficnet_forward.1} parent=0 // pred_check
    _
  $region7: #{trafficnet_forward.1} parent=0 // pred_check_branch
    %13 = sbr.rel (0) target = $region9
  $region8: #{trafficnet_forward.1} parent=0 // pred_region
    _
  $region9: #{trafficnet_forward.1} parent=0 // pred_fallthru
    _
  // Predicated region
  $region10: #{trafficnet_forward.1} parent=0 // pred_check
    _
  $region11: #{trafficnet_forward.1} parent=0 // pred_check_branch
    %15 = sbr.rel (0) target = $region13
  $region12: #{trafficnet_forward.1} parent=0 // pred_region
    _
  $region13: #{trafficnet_forward.1} parent=0 // pred_fallthru
    _
  // Predicated region
  $region14: #{trafficnet_forward.1} parent=0 // pred_check
    _
  $region15: #{trafficnet_forward.1} parent=0 // pred_check_branch
    %17 = sbr.rel (0) target = $region17
  $region16: #{trafficnet_forward.1} parent=0 // pred_region
    _
  $region17: #{trafficnet_forward.1} parent=0 // pred_fallthru
    _
  // Predicated region
  $region18: #{trafficnet_forward.1} parent=0 // pred_check
    _
  $region19: #{trafficnet_forward.1} parent=0 // pred_check_branch
    %19 = sbr.rel (0) target = $region21
  $region20: #{trafficnet_forward.1} parent=0 // pred_region
    _
  $region21: #{trafficnet_forward.1} parent=0 // pred_fallthru
    _
  %v20 = vld [vmem:[%s0] sm:$0xff]
  %v21 = vld [vmem:[%s2] sm:$0x1]
  %v22 = vld [vmem:[%s3] sm:$0xff]
  %v23 = vld [vmem:[%s3 + $0x8] sm:$0xff]
  %v24 = vld [vmem:[%s3 + $0x10] sm:$0xff]
  %v25 = vld [vmem:[%s3 + $0x18] sm:$0xff]
  %v26 = vld [vmem:[%s3 + $0x20] sm:$0xff]
  %v27 = vld [vmem:[%s3 + $0x28] sm:$0xff]
  %v28 = vld [vmem:[%s3 + $0x30] sm:$0xff]
  %v29 = vld [vmem:[%s3 + $0x38] sm:$0xff]
  %v30 = vld [vmem:[%s4] sm:$0x1]
  %31 = vst [vmem:[%s5] sm:$0xff] 0.0
  %v32 = vld [vmem:[%s1] sm:$0x1]
  %34 = vset.pattern.permute.xlu0 0
  %35 = vperm.xlu0 %34, %v20
  %v36 = vpop.permute.xlu0 %35
  %v38 = vlaneseq
  %v39 = vshrl.u32 %v38, 7
  %v40 = vsub.s32 0, %v39
  %v41 = vrot.slane %v32, %v40
  %v42 = vmul.f32 %v36, %v41
  %v43 = vld [vmem:[%s1 + $0x1] sm:$0x1]
  %44 = vset.pattern.permute.xlu0 1
  %45 = vperm.xlu0 %44, %v20
  %v46 = vpop.permute.xlu0 %45
  %v48 = vlaneseq
  %v49 = vshrl.u32 %v48, 7
  %v50 = vsub.s32 0, %v49
  %v51 = vrot.slane %v43, %v50
  %v52 = vmul.f32 %v46, %v51
  %v53 = vadd.f32 %v42, %v52
  %v55 = vlaneseq
  %v56 = vshrl.u32 %v55, 7
  %v57 = vsub.s32 0, %v56
  %v58 = vrot.slane %v21, %v57
  %v60 = vadd.f32 %v53, %v58
  %vm61 = vcmp.gt.f32.partialorder 0.0, 1.0
  %v62 = vsel %vm61, 1, 0
  %v63 = vcvt.s32.f32 %v62
  %v64 = vadd.f32 %v60, 0.0
  %v65 = vsub.f32 %v64, %v63
  %vm66 = vcmp.gt.f32.partialorder %v65, 1.0
  %v67 = vsel %vm66, 1, 0
  %v68 = vcvt.s32.f32 %v67
  %vm69 = vcmask 523264
  %70 = vst.msk [vmem:[#allocation2] sm:$0xff] %vm69, %v68
  %v71 = vmul.f32 %v65, 0.95
  %v72 = vadd.f32 %v71, %v60
  %v73 = vsub.f32 %v72, %v68
  %vm74 = vcmp.gt.f32.partialorder %v73, 1.0
  %v75 = vsel %vm74, 1, 0
  %v76 = vcvt.s32.f32 %v75
  %s77 = scalar_lea.vmem [#allocation2], 8
  %78 = vst.msk [vmem:[%s77] sm:$0xff] %vm69, %v76
  %v79 = vmul.f32 %v73, 0.95
  %v80 = vadd.f32 %v79, %v60
  %v81 = vsub.f32 %v80, %v76
  %vm82 = vcmp.gt.f32.partialorder %v81, 1.0
  %v83 = vsel %vm82, 1, 0
  %v84 = vcvt.s32.f32 %v83
  %s85 = scalar_lea.vmem [#allocation2], 16
  %86 = vst.msk [vmem:[%s85] sm:$0xff] %vm69, %v84
  %v87 = vmul.f32 %v81, 0.95
  %v88 = vadd.f32 %v87, %v60
  %v89 = vsub.f32 %v88, %v84
  %vm90 = vcmp.gt.f32.partialorder %v89, 1.0
  %v91 = vsel %vm90, 1, 0
  %v92 = vcvt.s32.f32 %v91
  %s93 = scalar_lea.vmem [#allocation2], 24
  %94 = vst.msk [vmem:[%s93] sm:$0xff] %vm69, %v92
  %v95 = vmul.f32 %v89, 0.95
  %v96 = vadd.f32 %v95, %v60
  %v97 = vsub.f32 %v96, %v92
  %vm98 = vcmp.gt.f32.partialorder %v97, 1.0
  %v99 = vsel %vm98, 1, 0
  %v100 = vcvt.s32.f32 %v99
  %s101 = scalar_lea.vmem [#allocation2], 32
  %102 = vst.msk [vmem:[%s101] sm:$0xff] %vm69, %v100
  %v103 = vmul.f32 %v97, 0.95
  %v104 = vadd.f32 %v103, %v60
  %v105 = vsub.f32 %v104, %v100
  %vm106 = vcmp.gt.f32.partialorder %v105, 1.0
  %v107 = vsel %vm106, 1, 0
  %v108 = vcvt.s32.f32 %v107
  %s109 = scalar_lea.vmem [#allocation2], 40
  %110 = vst.msk [vmem:[%s109] sm:$0xff] %vm69, %v108
  %v111 = vmul.f32 %v105, 0.95
  %v112 = vadd.f32 %v111, %v60
  %v113 = vsub.f32 %v112, %v108
  %vm114 = vcmp.gt.f32.partialorder %v113, 1.0
  %v115 = vsel %vm114, 1, 0
  %v116 = vcvt.s32.f32 %v115
  %s117 = scalar_lea.vmem [#allocation2], 48
  %118 = vst.msk [vmem:[%s117] sm:$0xff] %vm69, %v116
  %v119 = vmul.f32 %v113, 0.95
  %v120 = vadd.f32 %v119, %v60
  %v121 = vsub.f32 %v120, %v116
  %vm122 = vcmp.gt.f32.partialorder %v121, 1.0
  %v123 = vsel %vm122, 1, 0
  %v124 = vcvt.s32.f32 %v123
  %s125 = scalar_lea.vmem [#allocation2], 56
  %126 = vst.msk [vmem:[%s125] sm:$0xff] %vm69, %v124
  %v127 = vmul.f32 %v121, 0.95
  %v128 = vadd.f32 %v127, %v60
  %v129 = vsub.f32 %v128, %v124
  %vm130 = vcmp.gt.f32.partialorder %v129, 1.0
  %v131 = vsel %vm130, 1, 0
  %v132 = vcvt.s32.f32 %v131
  %s133 = scalar_lea.vmem [#allocation2], 64
  %134 = vst.msk [vmem:[%s133] sm:$0xff] %vm69, %v132
  %v135 = vmul.f32 %v129, 0.95
  %v136 = vadd.f32 %v135, %v60
  %v137 = vsub.f32 %v136, %v132
  %vm138 = vcmp.gt.f32.partialorder %v137, 1.0
  %v139 = vsel %vm138, 1, 0
  %v140 = vcvt.s32.f32 %v139
  %s141 = scalar_lea.vmem [#allocation2], 72
  %142 = vst.msk [vmem:[%s141] sm:$0xff] %vm69, %v140
  %v143 = vmul.f32 %v137, 0.95
  %v144 = vadd.f32 %v143, %v60
  %v145 = vsub.f32 %v144, %v140
  %vm146 = vcmp.gt.f32.partialorder %v145, 1.0
  %v147 = vsel %vm146, 1, 0
  %v148 = vcvt.s32.f32 %v147
  %s149 = scalar_lea.vmem [#allocation2], 80
  %150 = vst.msk [vmem:[%s149] sm:$0xff] %vm69, %v148
  %v151 = vmul.f32 %v145, 0.95
  %v152 = vadd.f32 %v151, %v60
  %v153 = vsub.f32 %v152, %v148
  %vm154 = vcmp.gt.f32.partialorder %v153, 1.0
  %v155 = vsel %vm154, 1, 0
  %v156 = vcvt.s32.f32 %v155
  %s157 = scalar_lea.vmem [#allocation2], 88
  %158 = vst.msk [vmem:[%s157] sm:$0xff] %vm69, %v156
  %v159 = vmul.f32 %v153, 0.95
  %v160 = vadd.f32 %v159, %v60
  %v161 = vsub.f32 %v160, %v156
  %vm162 = vcmp.gt.f32.partialorder %v161, 1.0
  %v163 = vsel %vm162, 1, 0
  %v164 = vcvt.s32.f32 %v163
  %s165 = scalar_lea.vmem [#allocation2], 96
  %166 = vst.msk [vmem:[%s165] sm:$0xff] %vm69, %v164
  %v167 = vmul.f32 %v161, 0.95
  %v168 = vadd.f32 %v167, %v60
  %v169 = vsub.f32 %v168, %v164
  %vm170 = vcmp.gt.f32.partialorder %v169, 1.0
  %v171 = vsel %vm170, 1, 0
  %v172 = vcvt.s32.f32 %v171
  %s173 = scalar_lea.vmem [#allocation2], 104
  %174 = vst.msk [vmem:[%s173] sm:$0xff] %vm69, %v172
  %v175 = vmul.f32 %v169, 0.95
  %v176 = vadd.f32 %v175, %v60
  %v177 = vsub.f32 %v176, %v172
  %vm178 = vcmp.gt.f32.partialorder %v177, 1.0
  %v179 = vsel %vm178, 1, 0
  %v180 = vcvt.s32.f32 %v179
  %s181 = scalar_lea.vmem [#allocation2], 112
  %182 = vst.msk [vmem:[%s181] sm:$0xff] %vm69, %v180
  %v183 = vmul.f32 %v177, 0.95
  %v184 = vadd.f32 %v183, %v60
  %v185 = vsub.f32 %v184, %v180
  %vm186 = vcmp.gt.f32.partialorder %v185, 1.0
  %v187 = vsel %vm186, 1, 0
  %v188 = vcvt.s32.f32 %v187
  %s189 = scalar_lea.vmem [#allocation2], 120
  %190 = vst.msk [vmem:[%s189] sm:$0xff] %vm69, %v188
  %v191 = vmul.f32 %v185, 0.95
  %v192 = vadd.f32 %v191, %v60
  %v193 = vsub.f32 %v192, %v188
  %vm194 = vcmp.gt.f32.partialorder %v193, 1.0
  %v195 = vsel %vm194, 1, 0
  %v196 = vcvt.s32.f32 %v195
  %s197 = scalar_lea.vmem [#allocation2], 128
  %198 = vst.msk [vmem:[%s197] sm:$0xff] %vm69, %v196
  %v199 = vmul.f32 %v193, 0.95
  %v200 = vadd.f32 %v199, %v60
  %v201 = vsub.f32 %v200, %v196
  %vm202 = vcmp.gt.f32.partialorder %v201, 1.0
  %v203 = vsel %vm202, 1, 0
  %v204 = vcvt.s32.f32 %v203
  %s205 = scalar_lea.vmem [#allocation2], 136
  %206 = vst.msk [vmem:[%s205] sm:$0xff] %vm69, %v204
  %v207 = vmul.f32 %v201, 0.95
  %v208 = vadd.f32 %v207, %v60
  %v209 = vsub.f32 %v208, %v204
  %vm210 = vcmp.gt.f32.partialorder %v209, 1.0
  %v211 = vsel %vm210, 1, 0
  %v212 = vcvt.s32.f32 %v211
  %s213 = scalar_lea.vmem [#allocation2], 144
  %214 = vst.msk [vmem:[%s213] sm:$0xff] %vm69, %v212
  %v215 = vmul.f32 %v209, 0.95
  %v216 = vadd.f32 %v215, %v60
  %v217 = vsub.f32 %v216, %v212
  %vm218 = vcmp.gt.f32.partialorder %v217, 1.0
  %v219 = vsel %vm218, 1, 0
  %v220 = vcvt.s32.f32 %v219
  %s221 = scalar_lea.vmem [#allocation2], 152
  %222 = vst.msk [vmem:[%s221] sm:$0xff] %vm69, %v220
  %v223 = vld [vmem:[#allocation2] sm:$0xff]
  %v224 = vld [vmem:[#allocation2 + $0x8] sm:$0xff]
  %v225 = vld [vmem:[#allocation2 + $0x10] sm:$0xff]
  %v226 = vld [vmem:[#allocation2 + $0x18] sm:$0xff]
  %v227 = vld [vmem:[#allocation2 + $0x20] sm:$0xff]
  %v228 = vld [vmem:[#allocation2 + $0x28] sm:$0xff]
  %v229 = vld [vmem:[#allocation2 + $0x30] sm:$0xff]
  %v230 = vld [vmem:[#allocation2 + $0x38] sm:$0xff]
  %v231 = vld [vmem:[#allocation2 + $0x40] sm:$0xff]
  %v232 = vld [vmem:[#allocation2 + $0x48] sm:$0xff]
  %v233 = vld [vmem:[#allocation2 + $0x50] sm:$0xff]
  %v234 = vld [vmem:[#allocation2 + $0x58] sm:$0xff]
  %v235 = vld [vmem:[#allocation2 + $0x60] sm:$0xff]
  %v236 = vld [vmem:[#allocation2 + $0x68] sm:$0xff]
  %v237 = vld [vmem:[#allocation2 + $0x70] sm:$0xff]
  %v238 = vld [vmem:[#allocation2 + $0x78] sm:$0xff]
  %v239 = vld [vmem:[#allocation2 + $0x80] sm:$0xff]
  %v240 = vld [vmem:[#allocation2 + $0x88] sm:$0xff]
  %v241 = vld [vmem:[#allocation2 + $0x90] sm:$0xff]
  %v242 = vld [vmem:[#allocation2 + $0x98] sm:$0xff]
  %v244 = vlaneseq
  %v245 = vshrl.u32 %v244, 7
  %v246 = vsub.s32 0, %v245
  %v247 = vrot.slane %v30, %v246
  %v250 = vsel %vm69, %v223, 0
  %v253 = vsel %vm69, %v224, 0
  %v256 = vsel %vm69, %v225, 0
  %v259 = vsel %vm69, %v226, 0
  %v262 = vsel %vm69, %v227, 0
  %v265 = vsel %vm69, %v228, 0
  %v268 = vsel %vm69, %v229, 0
  %v271 = vsel %vm69, %v230, 0
  %v274 = vsel %vm69, %v231, 0
  %v277 = vsel %vm69, %v232, 0
  %v280 = vsel %vm69, %v233, 0
  %v283 = vsel %vm69, %v234, 0
  %v286 = vsel %vm69, %v235, 0
  %v289 = vsel %vm69, %v236, 0
  %v292 = vsel %vm69, %v237, 0
  %v295 = vsel %vm69, %v238, 0
  %v298 = vsel %vm69, %v239, 0
  %v301 = vsel %vm69, %v240, 0
  %v304 = vsel %vm69, %v241, 0
  %v307 = vsel %vm69, %v242, 0
  %309 = vmatprep.subr.mxu0 0.0
  %310 = vmatpush1.msra.mxu0 %v22
  %311 = vmatprep.subr.mxu0 0.0
  %312 = vmatpush1.msra.mxu0 %v23
  %313 = vmatprep.subr.mxu0 0.0
  %314 = vmatpush1.msra.mxu0 %v24
  %315 = vmatprep.subr.mxu0 0.0
  %316 = vmatpush1.msra.mxu0 %v25
  %317 = vmatprep.subr.mxu0 0.0
  %318 = vmatpush1.msra.mxu0 %v26
  %319 = vmatprep.subr.mxu0 0.0
  %320 = vmatpush1.msra.mxu0 %v27
  %321 = vmatprep.subr.mxu0 0.0
  %322 = vmatpush1.msra.mxu0 %v28
  %323 = vmatprep.subr.mxu0 0.0
  %324 = vmatpush1.msra.mxu0 %v29
  %325 = vmatprep.subr.mxu0 0.0
  %326 = vmatpush1.msra.mxu0 0.0
  %327 = vmatprep.subr.mxu0 0.0
  %328 = vmatpush1.msra.mxu0 0.0
  %329 = vmatprep.subr.mxu0 0.0
  %330 = vmatpush1.msra.mxu0 0.0
  %331 = vmatprep.subr.mxu0 0.0
  %332 = vmatpush1.msra.mxu0 0.0
  %333 = vmatprep.subr.mxu0 0.0
  %334 = vmatpush1.msra.mxu0 0.0
  %335 = vmatprep.subr.mxu0 0.0
  %336 = vmatpush1.msra.mxu0 0.0
  %337 = vmatprep.subr.mxu0 0.0
  %338 = vmatpush1.msra.mxu0 0.0
  %339 = vmatprep.subr.mxu0 0.0
  %340 = vmatpush1.msra.mxu0 0.0
  %341 = vmatprep.subr.mxu0 0.0
  %342 = vmatpush1.msra.mxu0 0.0
  %343 = vmatprep.subr.mxu0 0.0
  %344 = vmatpush1.msra.mxu0 0.0
  %345 = vmatprep.subr.mxu0 0.0
  %346 = vmatpush1.msra.mxu0 0.0
  %347 = vmatprep.subr.mxu0 0.0
  %348 = vmatpush1.msra.mxu0 0.0
  %349 = vmatprep.subr.mxu0 0.0
  %350 = vmatpush1.msra.mxu0 0.0
  %351 = vmatprep.subr.mxu0 0.0
  %352 = vmatpush1.msra.mxu0 0.0
  %353 = vmatprep.subr.mxu0 0.0
  %354 = vmatpush1.msra.mxu0 0.0
  %355 = vmatprep.subr.mxu0 0.0
  %356 = vmatpush1.msra.mxu0 0.0
  %357 = vmatprep.subr.mxu0 0.0
  %358 = vmatpush1.msra.mxu0 0.0
  %359 = vmatprep.subr.mxu0 0.0
  %360 = vmatpush1.msra.mxu0 0.0
  %361 = vmatprep.subr.mxu0 0.0
  %362 = vmatpush1.msra.mxu0 0.0
  %363 = vmatprep.subr.mxu0 0.0
  %364 = vmatpush1.msra.mxu0 0.0
  %365 = vmatprep.subr.mxu0 0.0
  %366 = vmatpush1.msra.mxu0 0.0
  %367 = vmatprep.subr.mxu0 0.0
  %368 = vmatpush1.msra.mxu0 0.0
  %369 = vmatprep.subr.mxu0 0.0
  %370 = vmatpush1.msra.mxu0 0.0
  %371 = vmatprep.subr.mxu0 0.0
  %372 = vmatpush1.msra.mxu0 0.0
  %373 = vmatprep.mubr.f32.mxu0 0.0
  %374 = vmatmul.mubr.f32.gmra.mrb[0].mxu0 %v250
  %v375 = vpop.f32.mrb[0].mxu0
  %v376 = vadd.f32 %v247, %v375
  %v377 = vpop.f32.mrb[0].mxu0
  %378 = vmatprep.mubr.f32.mxu0 0.0
  %379 = vmatmul.mubr.f32.gmra.mrb[0].mxu0 %v253
  %v380 = vpop.f32.mrb[0].mxu0
  %v381 = vadd.f32 %v247, %v380
  %v382 = vpop.f32.mrb[0].mxu0
  %383 = vmatprep.mubr.f32.mxu0 0.0
  %384 = vmatmul.mubr.f32.gmra.mrb[0].mxu0 %v256
  %v385 = vpop.f32.mrb[0].mxu0
  %v386 = vadd.f32 %v247, %v385
  %v387 = vpop.f32.mrb[0].mxu0
  %388 = vmatprep.mubr.f32.mxu0 0.0
  %389 = vmatmul.mubr.f32.gmra.mrb[0].mxu0 %v259
  %v390 = vpop.f32.mrb[0].mxu0
  %v391 = vadd.f32 %v247, %v390
  %v392 = vpop.f32.mrb[0].mxu0
  %393 = vmatprep.mubr.f32.mxu0 0.0
  %394 = vmatmul.mubr.f32.gmra.mrb[0].mxu0 %v262
  %v395 = vpop.f32.mrb[0].mxu0
  %v396 = vadd.f32 %v247, %v395
  %v397 = vpop.f32.mrb[0].mxu0
  %398 = vmatprep.mubr.f32.mxu0 0.0
  %399 = vmatmul.mubr.f32.gmra.mrb[0].mxu0 %v265
  %v400 = vpop.f32.mrb[0].mxu0
  %v401 = vadd.f32 %v247, %v400
  %v402 = vpop.f32.mrb[0].mxu0
  %403 = vmatprep.mubr.f32.mxu0 0.0
  %404 = vmatmul.mubr.f32.gmra.mrb[0].mxu0 %v268
  %v405 = vpop.f32.mrb[0].mxu0
  %v406 = vadd.f32 %v247, %v405
  %v407 = vpop.f32.mrb[0].mxu0
  %408 = vmatprep.mubr.f32.mxu0 0.0
  %409 = vmatmul.mubr.f32.gmra.mrb[0].mxu0 %v271
  %v410 = vpop.f32.mrb[0].mxu0
  %v411 = vadd.f32 %v247, %v410
  %v412 = vpop.f32.mrb[0].mxu0
  %413 = vmatprep.mubr.f32.mxu0 0.0
  %414 = vmatmul.mubr.f32.gmra.mrb[0].mxu0 %v274
  %v415 = vpop.f32.mrb[0].mxu0
  %v416 = vadd.f32 %v247, %v415
  %v417 = vpop.f32.mrb[0].mxu0
  %418 = vmatprep.mubr.f32.mxu0 0.0
  %419 = vmatmul.mubr.f32.gmra.mrb[0].mxu0 %v277
  %v420 = vpop.f32.mrb[0].mxu0
  %v421 = vadd.f32 %v247, %v420
  %v422 = vpop.f32.mrb[0].mxu0
  %423 = vmatprep.mubr.f32.mxu0 0.0
  %424 = vmatmul.mubr.f32.gmra.mrb[0].mxu0 %v280
  %v425 = vpop.f32.mrb[0].mxu0
  %v426 = vadd.f32 %v247, %v425
  %v427 = vpop.f32.mrb[0].mxu0
  %428 = vmatprep.mubr.f32.mxu0 0.0
  %429 = vmatmul.mubr.f32.gmra.mrb[0].mxu0 %v283
  %v430 = vpop.f32.mrb[0].mxu0
  %v431 = vadd.f32 %v247, %v430
  %v432 = vpop.f32.mrb[0].mxu0
  %433 = vmatprep.mubr.f32.mxu0 0.0
  %434 = vmatmul.mubr.f32.gmra.mrb[0].mxu0 %v286
  %v435 = vpop.f32.mrb[0].mxu0
  %v436 = vadd.f32 %v247, %v435
  %v437 = vpop.f32.mrb[0].mxu0
  %438 = vmatprep.mubr.f32.mxu0 0.0
  %439 = vmatmul.mubr.f32.gmra.mrb[0].mxu0 %v289
  %v440 = vpop.f32.mrb[0].mxu0
  %v441 = vadd.f32 %v247, %v440
  %v442 = vpop.f32.mrb[0].mxu0
  %443 = vmatprep.mubr.f32.mxu0 0.0
  %444 = vmatmul.mubr.f32.gmra.mrb[0].mxu0 %v292
  %v445 = vpop.f32.mrb[0].mxu0
  %v446 = vadd.f32 %v247, %v445
  %v447 = vpop.f32.mrb[0].mxu0
  %448 = vmatprep.mubr.f32.mxu0 0.0
  %449 = vmatmul.mubr.f32.gmra.mrb[0].mxu0 %v295
  %v450 = vpop.f32.mrb[0].mxu0
  %v451 = vadd.f32 %v247, %v450
  %v452 = vpop.f32.mrb[0].mxu0
  %453 = vmatprep.mubr.f32.mxu0 0.0
  %454 = vmatmul.mubr.f32.gmra.mrb[0].mxu0 %v298
  %v455 = vpop.f32.mrb[0].mxu0
  %v456 = vadd.f32 %v247, %v455
  %v457 = vpop.f32.mrb[0].mxu0
  %458 = vmatprep.mubr.f32.mxu0 0.0
  %459 = vmatmul.mubr.f32.gmra.mrb[0].mxu0 %v301
  %v460 = vpop.f32.mrb[0].mxu0
  %v461 = vadd.f32 %v247, %v460
  %v462 = vpop.f32.mrb[0].mxu0
  %463 = vmatprep.mubr.f32.mxu0 0.0
  %464 = vmatmul.mubr.f32.gmra.mrb[0].mxu0 %v304
  %v465 = vpop.f32.mrb[0].mxu0
  %v466 = vadd.f32 %v247, %v465
  %v467 = vpop.f32.mrb[0].mxu0
  %468 = vmatprep.mubr.f32.mxu0 0.0
  %469 = vmatmul.mubr.f32.gmra.mrb[0].mxu0 %v307
  %v470 = vpop.f32.mrb[0].mxu0
  %v471 = vadd.f32 %v247, %v470
  %v472 = vpop.f32.mrb[0].mxu0
  %473 = vdwg.mxu0
  %vm474 = vcmask 15360
  %475 = vst.msk [vmem:[#allocation3] sm:$0xff] %vm474, %v376
  %476 = vst.msk [vmem:[#allocation3 + $0x8] sm:$0xff] %vm474, %v381
  %477 = vst.msk [vmem:[#allocation3 + $0x10] sm:$0xff] %vm474, %v386
  %478 = vst.msk [vmem:[#allocation3 + $0x18] sm:$0xff] %vm474, %v391
  %479 = vst.msk [vmem:[#allocation3 + $0x20] sm:$0xff] %vm474, %v396
  %480 = vst.msk [vmem:[#allocation3 + $0x28] sm:$0xff] %vm474, %v401
  %481 = vst.msk [vmem:[#allocation3 + $0x30] sm:$0xff] %vm474, %v406
  %482 = vst.msk [vmem:[#allocation3 + $0x38] sm:$0xff] %vm474, %v411
  %483 = vst.msk [vmem:[#allocation3 + $0x40] sm:$0xff] %vm474, %v416
  %484 = vst.msk [vmem:[#allocation3 + $0x48] sm:$0xff] %vm474, %v421
  %485 = vst.msk [vmem:[#allocation3 + $0x50] sm:$0xff] %vm474, %v426
  %486 = vst.msk [vmem:[#allocation3 + $0x58] sm:$0xff] %vm474, %v431
  %487 = vst.msk [vmem:[#allocation3 + $0x60] sm:$0xff] %vm474, %v436
  %488 = vst.msk [vmem:[#allocation3 + $0x68] sm:$0xff] %vm474, %v441
  %489 = vst.msk [vmem:[#allocation3 + $0x70] sm:$0xff] %vm474, %v446
  %490 = vst.msk [vmem:[#allocation3 + $0x78] sm:$0xff] %vm474, %v451
  %491 = vst.msk [vmem:[#allocation3 + $0x80] sm:$0xff] %vm474, %v456
  %492 = vst.msk [vmem:[#allocation3 + $0x88] sm:$0xff] %vm474, %v461
  %493 = vst.msk [vmem:[#allocation3 + $0x90] sm:$0xff] %vm474, %v466
  %494 = vst.msk [vmem:[#allocation3 + $0x98] sm:$0xff] %vm474, %v471
  %v495 = vld [vmem:[#allocation3] sm:$0xff]
  %v496 = vadd.f32 %v495, 0.0
  %v497 = vsub.f32 %v496, %v63
  %vm498 = vcmp.gt.f32.partialorder %v497, 1.0
  %v499 = vsel %vm498, 1, 0
  %v500 = vcvt.s32.f32 %v499
  %501 = vst.msk [vmem:[%s5] sm:$0xff] %vm474, %v500
  %503 = vrot.lane.b32.xlu0 %v497, 40
  %v504 = vpop.permute.xlu0 %503
  %vm506 = vcmask 343360
  %507 = vst.msk [vmem:[%s5] sm:$0xff] %vm506, %v504
  %v508 = vld [vmem:[#allocation3 + $0x8] sm:$0xff]
  %v509 = vmul.f32 %v497, 0.95
  %v510 = vadd.f32 %v509, %v508
  %v511 = vsub.f32 %v510, %v500
  %vm512 = vcmp.gt.f32.partialorder %v511, 1.0
  %v513 = vsel %vm512, 1, 0
  %v514 = vcvt.s32.f32 %v513
  %516 = vrot.lane.b32.xlu0 %v514, 2
  %v517 = vpop.permute.xlu0 %516
  %vm519 = vcmask 31760
  %520 = vst.msk [vmem:[%s5] sm:$0xff] %vm519, %v517
  %522 = vrot.lane.b32.xlu0 %v511, 42
  %v523 = vpop.permute.xlu0 %522
  %vm525 = vcmask 359760
  %526 = vst.msk [vmem:[%s5] sm:$0xff] %vm525, %v523
  %v527 = vld [vmem:[#allocation3 + $0x10] sm:$0xff]
  %v528 = vmul.f32 %v511, 0.95
  %v529 = vadd.f32 %v528, %v527
  %v530 = vsub.f32 %v529, %v514
  %vm531 = vcmp.gt.f32.partialorder %v530, 1.0
  %v532 = vsel %vm531, 1, 0
  %v533 = vcvt.s32.f32 %v532
  %535 = vrot.lane.b32.xlu0 %v533, 4
  %v536 = vpop.permute.xlu0 %535
  %vm538 = vcmask 48160
  %539 = vst.msk [vmem:[%s5] sm:$0xff] %vm538, %v536
  %541 = vrot.lane.b32.xlu0 %v530, 44
  %v542 = vpop.permute.xlu0 %541
  %vm544 = vcmask 376160
  %545 = vst.msk [vmem:[%s5] sm:$0xff] %vm544, %v542
  %v546 = vld [vmem:[#allocation3 + $0x18] sm:$0xff]
  %v547 = vmul.f32 %v530, 0.95
  %v548 = vadd.f32 %v547, %v546
  %v549 = vsub.f32 %v548, %v533
  %vm550 = vcmp.gt.f32.partialorder %v549, 1.0
  %v551 = vsel %vm550, 1, 0
  %v552 = vcvt.s32.f32 %v551
  %554 = vrot.lane.b32.xlu0 %v552, 6
  %v555 = vpop.permute.xlu0 %554
  %vm557 = vcmask 64560
  %558 = vst.msk [vmem:[%s5] sm:$0xff] %vm557, %v555
  %560 = vrot.lane.b32.xlu0 %v549, 46
  %v561 = vpop.permute.xlu0 %560
  %vm563 = vcmask 392560
  %564 = vst.msk [vmem:[%s5] sm:$0xff] %vm563, %v561
  %v565 = vld [vmem:[#allocation3 + $0x20] sm:$0xff]
  %v566 = vmul.f32 %v549, 0.95
  %v567 = vadd.f32 %v566, %v565
  %v568 = vsub.f32 %v567, %v552
  %vm569 = vcmp.gt.f32.partialorder %v568, 1.0
  %v570 = vsel %vm569, 1, 0
  %v571 = vcvt.s32.f32 %v570
  %573 = vrot.lane.b32.xlu0 %v571, 8
  %v574 = vpop.permute.xlu0 %573
  %vm576 = vcmask 80960
  %577 = vst.msk [vmem:[%s5] sm:$0xff] %vm576, %v574
  %579 = vrot.lane.b32.xlu0 %v568, 48
  %v580 = vpop.permute.xlu0 %579
  %vm582 = vcmask 408960
  %583 = vst.msk [vmem:[%s5] sm:$0xff] %vm582, %v580
  %v584 = vld [vmem:[#allocation3 + $0x28] sm:$0xff]
  %v585 = vmul.f32 %v568, 0.95
  %v586 = vadd.f32 %v585, %v584
  %v587 = vsub.f32 %v586, %v571
  %vm588 = vcmp.gt.f32.partialorder %v587, 1.0
  %v589 = vsel %vm588, 1, 0
  %v590 = vcvt.s32.f32 %v589
  %592 = vrot.lane.b32.xlu0 %v590, 10
  %v593 = vpop.permute.xlu0 %592
  %vm595 = vcmask 97360
  %596 = vst.msk [vmem:[%s5] sm:$0xff] %vm595, %v593
  %598 = vrot.lane.b32.xlu0 %v587, 50
  %v599 = vpop.permute.xlu0 %598
  %vm601 = vcmask 425360
  %602 = vst.msk [vmem:[%s5] sm:$0xff] %vm601, %v599
  %v603 = vld [vmem:[#allocation3 + $0x30] sm:$0xff]
  %v604 = vmul.f32 %v587, 0.95
  %v605 = vadd.f32 %v604, %v603
  %v606 = vsub.f32 %v605, %v590
  %vm607 = vcmp.gt.f32.partialorder %v606, 1.0
  %v608 = vsel %vm607, 1, 0
  %v609 = vcvt.s32.f32 %v608
  %611 = vrot.lane.b32.xlu0 %v609, 12
  %v612 = vpop.permute.xlu0 %611
  %vm614 = vcmask 113760
  %615 = vst.msk [vmem:[%s5] sm:$0xff] %vm614, %v612
  %617 = vrot.lane.b32.xlu0 %v606, 52
  %v618 = vpop.permute.xlu0 %617
  %vm620 = vcmask 441760
  %621 = vst.msk [vmem:[%s5] sm:$0xff] %vm620, %v618
  %v622 = vld [vmem:[#allocation3 + $0x38] sm:$0xff]
  %v623 = vmul.f32 %v606, 0.95
  %v624 = vadd.f32 %v623, %v622
  %v625 = vsub.f32 %v624, %v609
  %vm626 = vcmp.gt.f32.partialorder %v625, 1.0
  %v627 = vsel %vm626, 1, 0
  %v628 = vcvt.s32.f32 %v627
  %630 = vrot.lane.b32.xlu0 %v628, 14
  %v631 = vpop.permute.xlu0 %630
  %vm633 = vcmask 130160
  %634 = vst.msk [vmem:[%s5] sm:$0xff] %vm633, %v631
  %636 = vrot.lane.b32.xlu0 %v625, 54
  %v637 = vpop.permute.xlu0 %636
  %vm639 = vcmask 458160
  %640 = vst.msk [vmem:[%s5] sm:$0xff] %vm639, %v637
  %v641 = vld [vmem:[#allocation3 + $0x40] sm:$0xff]
  %v642 = vmul.f32 %v625, 0.95
  %v643 = vadd.f32 %v642, %v641
  %v644 = vsub.f32 %v643, %v628
  %vm645 = vcmp.gt.f32.partialorder %v644, 1.0
  %v646 = vsel %vm645, 1, 0
  %v647 = vcvt.s32.f32 %v646
  %649 = vrot.lane.b32.xlu0 %v647, 16
  %v650 = vpop.permute.xlu0 %649
  %vm652 = vcmask 146560
  %653 = vst.msk [vmem:[%s5] sm:$0xff] %vm652, %v650
  %655 = vrot.lane.b32.xlu0 %v644, 56
  %v656 = vpop.permute.xlu0 %655
  %vm658 = vcmask 474560
  %659 = vst.msk [vmem:[%s5] sm:$0xff] %vm658, %v656
  %v660 = vld [vmem:[#allocation3 + $0x48] sm:$0xff]
  %v661 = vmul.f32 %v644, 0.95
  %v662 = vadd.f32 %v661, %v660
  %v663 = vsub.f32 %v662, %v647
  %vm664 = vcmp.gt.f32.partialorder %v663, 1.0
  %v665 = vsel %vm664, 1, 0
  %v666 = vcvt.s32.f32 %v665
  %668 = vrot.lane.b32.xlu0 %v666, 18
  %v669 = vpop.permute.xlu0 %668
  %vm671 = vcmask 162960
  %672 = vst.msk [vmem:[%s5] sm:$0xff] %vm671, %v669
  %674 = vrot.lane.b32.xlu0 %v663, 58
  %v675 = vpop.permute.xlu0 %674
  %vm677 = vcmask 490960
  %678 = vst.msk [vmem:[%s5] sm:$0xff] %vm677, %v675
  %v679 = vld [vmem:[#allocation3 + $0x50] sm:$0xff]
  %v680 = vmul.f32 %v663, 0.95
  %v681 = vadd.f32 %v680, %v679
  %v682 = vsub.f32 %v681, %v666
  %vm683 = vcmp.gt.f32.partialorder %v682, 1.0
  %v684 = vsel %vm683, 1, 0
  %v685 = vcvt.s32.f32 %v684
  %687 = vrot.lane.b32.xlu0 %v685, 20
  %v688 = vpop.permute.xlu0 %687
  %vm690 = vcmask 179360
  %691 = vst.msk [vmem:[%s5] sm:$0xff] %vm690, %v688
  %693 = vrot.lane.b32.xlu0 %v682, 60
  %v694 = vpop.permute.xlu0 %693
  %vm696 = vcmask 507360
  %697 = vst.msk [vmem:[%s5] sm:$0xff] %vm696, %v694
  %v698 = vld [vmem:[#allocation3 + $0x58] sm:$0xff]
  %v699 = vmul.f32 %v682, 0.95
  %v700 = vadd.f32 %v699, %v698
  %v701 = vsub.f32 %v700, %v685
  %vm702 = vcmp.gt.f32.partialorder %v701, 1.0
  %v703 = vsel %vm702, 1, 0
  %v704 = vcvt.s32.f32 %v703
  %706 = vrot.lane.b32.xlu0 %v704, 22
  %v707 = vpop.permute.xlu0 %706
  %vm709 = vcmask 195760
  %710 = vst.msk [vmem:[%s5] sm:$0xff] %vm709, %v707
  %712 = vrot.lane.b32.xlu0 %v701, 62
  %v713 = vpop.permute.xlu0 %712
  %vm715 = vcmask 523760
  %716 = vst.msk [vmem:[%s5] sm:$0xff] %vm715, %v713
  %v717 = vld [vmem:[#allocation3 + $0x60] sm:$0xff]
  %v718 = vmul.f32 %v701, 0.95
  %v719 = vadd.f32 %v718, %v717
  %v720 = vsub.f32 %v719, %v704
  %vm721 = vcmp.gt.f32.partialorder %v720, 1.0
  %v722 = vsel %vm721, 1, 0
  %v723 = vcvt.s32.f32 %v722
  %725 = vrot.lane.b32.xlu0 %v723, 24
  %v726 = vpop.permute.xlu0 %725
  %vm728 = vcmask 212160
  %729 = vst.msk [vmem:[%s5] sm:$0xff] %vm728, %v726
  %731 = vrot.lane.b32.xlu0 %v720, 64
  %v732 = vpop.permute.xlu0 %731
  %vm734 = vcmask 540160
  %735 = vst.msk [vmem:[%s5] sm:$0xff] %vm734, %v732
  %v736 = vld [vmem:[#allocation3 + $0x68] sm:$0xff]
  %v737 = vmul.f32 %v720, 0.95
  %v738 = vadd.f32 %v737, %v736
  %v739 = vsub.f32 %v738, %v723
  %vm740 = vcmp.gt.f32.partialorder %v739, 1.0
  %v741 = vsel %vm740, 1, 0
  %v742 = vcvt.s32.f32 %v741
  %744 = vrot.lane.b32.xlu0 %v742, 26
  %v745 = vpop.permute.xlu0 %744
  %vm747 = vcmask 228560
  %748 = vst.msk [vmem:[%s5] sm:$0xff] %vm747, %v745
  %750 = vrot.lane.b32.xlu0 %v739, 66
  %v751 = vpop.permute.xlu0 %750
  %vm753 = vcmask 556560
  %754 = vst.msk [vmem:[%s5] sm:$0xff] %vm753, %v751
  %v755 = vld [vmem:[#allocation3 + $0x70] sm:$0xff]
  %v756 = vmul.f32 %v739, 0.95
  %v757 = vadd.f32 %v756, %v755
  %v758 = vsub.f32 %v757, %v742
  %vm759 = vcmp.gt.f32.partialorder %v758, 1.0
  %v760 = vsel %vm759, 1, 0
  %v761 = vcvt.s32.f32 %v760
  %763 = vrot.lane.b32.xlu0 %v761, 28
  %v764 = vpop.permute.xlu0 %763
  %vm766 = vcmask 244960
  %767 = vst.msk [vmem:[%s5] sm:$0xff] %vm766, %v764
  %769 = vrot.lane.b32.xlu0 %v758, 68
  %v770 = vpop.permute.xlu0 %769
  %vm772 = vcmask 572960
  %773 = vst.msk [vmem:[%s5] sm:$0xff] %vm772, %v770
  %v774 = vld [vmem:[#allocation3 + $0x78] sm:$0xff]
  %v775 = vmul.f32 %v758, 0.95
  %v776 = vadd.f32 %v775, %v774
  %v777 = vsub.f32 %v776, %v761
  %vm778 = vcmp.gt.f32.partialorder %v777, 1.0
  %v779 = vsel %vm778, 1, 0
  %v780 = vcvt.s32.f32 %v779
  %782 = vrot.lane.b32.xlu0 %v780, 30
  %v783 = vpop.permute.xlu0 %782
  %vm785 = vcmask 261360
  %786 = vst.msk [vmem:[%s5] sm:$0xff] %vm785, %v783
  %788 = vrot.lane.b32.xlu0 %v777, 70
  %v789 = vpop.permute.xlu0 %788
  %vm791 = vcmask 589360
  %792 = vst.msk [vmem:[%s5] sm:$0xff] %vm791, %v789
  %v793 = vld [vmem:[#allocation3 + $0x80] sm:$0xff]
  %v794 = vmul.f32 %v777, 0.95
  %v795 = vadd.f32 %v794, %v793
  %v796 = vsub.f32 %v795, %v780
  %vm797 = vcmp.gt.f32.partialorder %v796, 1.0
  %v798 = vsel %vm797, 1, 0
  %v799 = vcvt.s32.f32 %v798
  %801 = vrot.lane.b32.xlu0 %v799, 32
  %v802 = vpop.permute.xlu0 %801
  %vm804 = vcmask 277760
  %805 = vst.msk [vmem:[%s5] sm:$0xff] %vm804, %v802
  %807 = vrot.lane.b32.xlu0 %v796, 72
  %v808 = vpop.permute.xlu0 %807
  %vm810 = vcmask 605760
  %811 = vst.msk [vmem:[%s5] sm:$0xff] %vm810, %v808
  %v812 = vld [vmem:[#allocation3 + $0x88] sm:$0xff]
  %v813 = vmul.f32 %v796, 0.95
  %v814 = vadd.f32 %v813, %v812
  %v815 = vsub.f32 %v814, %v799
  %vm816 = vcmp.gt.f32.partialorder %v815, 1.0
  %v817 = vsel %vm816, 1, 0
  %v818 = vcvt.s32.f32 %v817
  %820 = vrot.lane.b32.xlu0 %v818, 34
  %v821 = vpop.permute.xlu0 %820
  %vm823 = vcmask 294160
  %824 = vst.msk [vmem:[%s5] sm:$0xff] %vm823, %v821
  %826 = vrot.lane.b32.xlu0 %v815, 74
  %v827 = vpop.permute.xlu0 %826
  %vm829 = vcmask 622160
  %830 = vst.msk [vmem:[%s5] sm:$0xff] %vm829, %v827
  %v831 = vld [vmem:[#allocation3 + $0x90] sm:$0xff]
  %v832 = vmul.f32 %v815, 0.95
  %v833 = vadd.f32 %v832, %v831
  %v834 = vsub.f32 %v833, %v818
  %vm835 = vcmp.gt.f32.partialorder %v834, 1.0
  %v836 = vsel %vm835, 1, 0
  %v837 = vcvt.s32.f32 %v836
  %839 = vrot.lane.b32.xlu0 %v837, 36
  %v840 = vpop.permute.xlu0 %839
  %vm842 = vcmask 310560
  %843 = vst.msk [vmem:[%s5] sm:$0xff] %vm842, %v840
  %845 = vrot.lane.b32.xlu0 %v834, 76
  %v846 = vpop.permute.xlu0 %845
  %vm848 = vcmask 638560
  %849 = vst.msk [vmem:[%s5] sm:$0xff] %vm848, %v846
  %v850 = vld [vmem:[#allocation3 + $0x98] sm:$0xff]
  %v851 = vmul.f32 %v834, 0.95
  %v852 = vadd.f32 %v851, %v850
  %v853 = vsub.f32 %v852, %v837
  %vm854 = vcmp.gt.f32.partialorder %v853, 1.0
  %v855 = vsel %vm854, 1, 0
  %v856 = vcvt.s32.f32 %v855
  %858 = vrot.lane.b32.xlu0 %v856, 38
  %v859 = vpop.permute.xlu0 %858
  %vm861 = vcmask 326960
  %862 = vst.msk [vmem:[%s5] sm:$0xff] %vm861, %v859
  %864 = vrot.lane.b32.xlu0 %v853, 78
  %v865 = vpop.permute.xlu0 %864
  %vm867 = vcmask 654960
  %868 = vst.msk [vmem:[%s5] sm:$0xff] %vm867, %v865
  // Predicated region
  $region22: #{trafficnet_forward.1} parent=0 // pred_check
    _
  $region23: #{trafficnet_forward.1} parent=0 // pred_check_branch
    %870 = sbr.rel (0) target = $region25
  $region24: #{trafficnet_forward.1} parent=0 // pred_region
    _
  $region25: #{trafficnet_forward.1} parent=0 // pred_fallthru
    _
  // Predicated region
  $region26: #{trafficnet_forward.1} parent=0 // pred_check
    _
  $region27: #{trafficnet_forward.1} parent=0 // pred_check_branch
    %872 = sbr.rel (0) target = $region29
  $region28: #{trafficnet_forward.1} parent=0 // pred_region
    _
  $region29: #{trafficnet_forward.1} parent=0 // pred_fallthru
    _

</llo_original>
